<compile_context>
chip_gen: v5e
topology: v5e:2x2
jax: 0.10.0
libtpu: 0.0.40
codegen_flags: <defaults>
</compile_context>

<pallas_src>
import functools

import jax
import jax.numpy as jnp
from jax.experimental import pallas as pl
from jax.experimental.pallas import tpu as pltpu

# Module hyperparameters (from the PyTorch spec).
CTX_SIZE = 256
N_EMBED = 256
N_HEADS = 4
HEAD_SIZE = N_EMBED // N_HEADS   # 64
DROPOUT = 0.3  # TODO(synk): dropout implemented as identity (eval mode); training-mode dropout not ported.

_NEG_BIG = -1e30          # large finite negative (same trick as the TPU flash-attn kernels)
_BB_CAP = 4               # batch elements per grid step (pipeline overlap vs. VMEM)
_VMEM_BUDGET = 8 << 20    # per-step working-set budget used to bound bb
_VMEM_LIMIT = 32 << 20    # explicit scoped-VMEM limit (fits v5e/v6e/v7x)


def _attend(q, k, v, *, causal, mxu_dtype):
    """q (bb,Tq,H) already scaled; k, v (bb,Tkv,H); all f32. Returns f32 (bb,Tq,H)."""
    # Scores: contract the head dim directly (no materialized k transpose).
    s = jnp.einsum('bqh,bkh->bqk', q.astype(mxu_dtype), k.astype(mxu_dtype),
                   preferred_element_type=jnp.float32)            # (bb, Tq, Tkv) f32
    if causal:
        # Full-shape iotas: no rank-expanding broadcast of a computed mask.
        row = jax.lax.broadcasted_iota(jnp.int32, s.shape, 1)
        col = jax.lax.broadcasted_iota(jnp.int32, s.shape, 2)
        s = jnp.where(col > row, jnp.float32(_NEG_BIG), s)
    # Deferred-normalization softmax: exp + PV matmul first, then one broadcast
    # multiply on the (bb,Tq,H) output instead of the (bb,Tq,Tkv) probabilities.
    m = jnp.max(s, axis=-1, keepdims=True)
    p = jnp.exp(s - m)                                            # unnormalized, f32
    l = jnp.sum(p, axis=-1, keepdims=True)                        # (bb, Tq, 1) f32
    out = jnp.einsum('bqk,bkh->bqh', p.astype(mxu_dtype), v.astype(mxu_dtype),
                     preferred_element_type=jnp.float32)          # (bb, Tq, H) f32
    # Exact reciprocal: the approx EUP reciprocal fails 1e-3 parity on masked rows.
    return out * (1.0 / l)
    # dropout(p=0.3) == identity in eval mode.


def _self_attn_kernel(x_ref, wqkv_ref, o_ref, *, scale, causal, head_size, mxu_dtype):
    """One grid step == a block of `bb` batch elements, whole sequence."""
    x = x_ref[...]                                   # (bb, T, C)
    bb, t, c = x.shape
    h = head_size
    # Fused q/k/v projection: one (bb*T, C) @ (C, 3H) MXU matmul, f32 accumulation.
    qkv = jnp.dot(x.reshape(bb * t, c), wqkv_ref[...],
                  preferred_element_type=jnp.float32).reshape(bb, t, 3 * h)
    q = qkv[:, :, 0:h] * scale          # fold 1/sqrt(C) into q (T*H, not T*T, elems)
    k = qkv[:, :, h:2 * h]
    v = qkv[:, :, 2 * h:3 * h]
    out = _attend(q, k, v, causal=causal, mxu_dtype=mxu_dtype)
    o_ref[...] = out.astype(o_ref.dtype)


def _cross_attn_kernel(x_ref, z_ref, wq_ref, wkv_ref, o_ref, *, scale, causal,
                       head_size, mxu_dtype):
    x = x_ref[...]                                   # (bb, Tq, C)
    z = z_ref[...]                                   # (bb, Tkv, C_kv)
    bb, t_q, c = x.shape
    t_kv, c_kv = z.shape[1], z.shape[2]
    h = head_size
    q = jnp.dot(x.reshape(bb * t_q, c), wq_ref[...],
                preferred_element_type=jnp.float32).reshape(bb, t_q, h) * scale
    kv = jnp.dot(z.reshape(bb * t_kv, c_kv), wkv_ref[...],
                 preferred_element_type=jnp.float32).reshape(bb, t_kv, 2 * h)
    k = kv[:, :, 0:h]
    v = kv[:, :, h:2 * h]
    out = _attend(q, k, v, causal=causal, mxu_dtype=mxu_dtype)
    o_ref[...] = out.astype(o_ref.dtype)


def _pick_bb(B, t_q, t_kv, c, h, itemsize):
    """Largest divisor of B that keeps the per-step working set under budget."""
    per_b = (2 * t_q * c * itemsize        # x block (double-buffered)
             + 2 * t_kv * c * itemsize     # k/v source block (double-buffered)
             + t_q * 3 * h * 4             # fused projection (f32)
             + 2 * t_q * t_kv * 4          # scores + exp(scores) (f32)
             + t_q * h * 4                 # f32 attention output
             + 2 * t_q * h * itemsize)     # output block (double-buffered)
    cap = max(1, min(_BB_CAP, _VMEM_BUDGET // per_b))
    bb = 1
    for d in range(1, B + 1):
        if B % d == 0 and d <= cap:
            bb = d
    return bb


class AttentionHeadPallas:
    """Pallas port of the PyTorch AttentionHead (eval mode)."""

    def __init__(self, w_q, w_k, w_v, mask=False):
        self.mask = bool(mask)
        self.head_size = int(w_q.shape[1])
        self.n_embed = int(w_q.shape[0])
        # Weight fusion hoisted to init: no per-call concat / extra HBM round trip.
        self.w_qkv = jnp.concatenate([w_q, w_k, w_v], axis=1)    # (C, 3H) self-attn
        self.w_q = w_q                                           # (C, H)   cross-attn
        self.w_kv = jnp.concatenate([w_k, w_v], axis=1)          # (C, 2H)  cross-attn

    def __call__(self, x, mem=None):
        B, t_q, c = x.shape
        h = self.head_size
        z = mem if mem is not None else x
        t_kv, c_kv = z.shape[1], z.shape[-1]
        scale = float(c_kv) ** (-0.5)            # PyTorch uses C = z.shape[-1]
        mxu_dtype = jnp.bfloat16 if x.dtype == jnp.bfloat16 else jnp.float32

        bb = _pick_bb(B, t_q, t_kv, c, h, jnp.dtype(x.dtype).itemsize)
        grid = (B // bb,)
        params = pltpu.CompilerParams(dimension_semantics=("parallel",),
                                      vmem_limit_bytes=_VMEM_LIMIT)

        if mem is None:
            # Self-attention: x DMA'd once, reused for q and k/v.
            kernel = functools.partial(_self_attn_kernel, scale=scale,
                                       causal=self.mask, head_size=h,
                                       mxu_dtype=mxu_dtype)
            return pl.pallas_call(
                kernel,
                out_shape=jax.ShapeDtypeStruct((B, t_q, h), x.dtype),
                grid_spec=pltpu.PrefetchScalarGridSpec(
                    num_scalar_prefetch=0,
                    grid=grid,
                    in_specs=[
                        pl.BlockSpec((bb, t_q, c), lambda g: (g, 0, 0)),
                        pl.BlockSpec((c, 3 * h), lambda g: (0, 0)),
                    ],
                    # NOTE: output lane width == head_size (64). A lane-dense
                    # (>=128) store needs all-N_HEADS fusion, a call-site change.
                    out_specs=pl.BlockSpec((bb, t_q, h), lambda g: (g, 0, 0)),
                ),
                compiler_params=params,
            )(x, self.w_qkv)

        # Cross-attention: q from x, k/v from mem; supports T_q != T_kv.
        kernel = functools.partial(_cross_attn_kernel, scale=scale,
                                   causal=self.mask, head_size=h,
                                   mxu_dtype=mxu_dtype)
        return pl.pallas_call(
            kernel,
            out_shape=jax.ShapeDtypeStruct((B, t_q, h), x.dtype),
            grid_spec=pltpu.PrefetchScalarGridSpec(
                num_scalar_prefetch=0,
                grid=grid,
                in_specs=[
                    pl.BlockSpec((bb, t_q, c), lambda g: (g, 0, 0)),
                    pl.BlockSpec((bb, t_kv, c_kv), lambda g: (g, 0, 0)),
                    pl.BlockSpec((c, h), lambda g: (0, 0)),
                    pl.BlockSpec((c_kv, 2 * h), lambda g: (0, 0)),
                ],
                out_specs=pl.BlockSpec((bb, t_q, h), lambda g: (g, 0, 0)),
            ),
            compiler_params=params,
        )(x, z, self.w_q, self.w_kv)


def _reference(x, w_q, w_k, w_v, mem=None, mask=False):
    z = mem if mem is not None else x
    c = z.shape[-1]
    hi = jax.lax.Precision.HIGHEST
    xf, zf = x.astype(jnp.float32), z.astype(jnp.float32)
    q = jnp.einsum('btc,ch->bth', xf, w_q.astype(jnp.float32), precision=hi)
    k = jnp.einsum('btc,ch->bth', zf, w_k.astype(jnp.float32), precision=hi)
    v = jnp.einsum('btc,ch->bth', zf, w_v.astype(jnp.float32), precision=hi)
    s = jnp.einsum('bqh,bkh->bqk', q, k, precision=hi) * (float(c) ** -0.5)
    if mask:
        t_q, t_kv = s.shape[-2], s.shape[-1]
        keep = jnp.arange(t_kv)[None, :] <= jnp.arange(t_q)[:, None]
        s = jnp.where(keep, s, -jnp.inf)
    p = jax.nn.softmax(s, axis=-1)
    return jnp.einsum('bqk,bkh->bqh', p, v, precision=hi)


if __name__ == "__main__":
    key = jax.random.PRNGKey(0)
    k_x, k_x8, k_m, k_q, k_k, k_v = jax.random.split(key, 6)

    B, T, C, H = 2, 128, N_EMBED, HEAD_SIZE          # T <= ctx_size (256)

    x = jax.random.normal(k_x, (B, T, C), dtype=jnp.float32)
    x8 = jax.random.normal(k_x8, (8, T, C), dtype=jnp.float32)
    bound = 1.0 / (C ** 0.5)                         # nn.Linear-like init bound
    w_q = jax.random.uniform(k_q, (C, H), jnp.float32, -bound, bound)
    w_k = jax.random.uniform(k_k, (C, H), jnp.float32, -bound, bound)
    w_v = jax.random.uniform(k_v, (C, H), jnp.float32, -bound, bound)

    head_plain = AttentionHeadPallas(w_q, w_k, w_v, mask=False)
    head_causal = AttentionHeadPallas(w_q, w_k, w_v, mask=True)

    def check(out, ref, name, atol, rtol):
        out = jax.block_until_ready(out).astype(jnp.float32)
        ref = jax.block_until_ready(ref).astype(jnp.float32)
        assert jnp.allclose(out, ref, atol=atol, rtol=rtol), (
            f"mismatch: {name} (max |err| = {jnp.max(jnp.abs(out - ref)):.3e})")

    # 1) self-attention, no mask
    check(head_plain(x), _reference(x, w_q, w_k, w_v, mask=False),
          "self/no-mask", 2e-3, 2e-3)

    # 2) self-attention, causal mask
    check(head_causal(x), _reference(x, w_q, w_k, w_v, mask=True),
          "self/mask", 2e-3, 2e-3)

    # 3) cross-attention with a different key/value sequence length
    mem = jax.random.normal(k_m, (B, 64, C), dtype=jnp.float32)
    check(head_plain(x, mem=mem), _reference(x, w_q, w_k, w_v, mem=mem, mask=False),
          "cross", 2e-3, 2e-3)

    # 4) multi-step "parallel" grid (B=8 -> bb=4 -> 2 pipelined steps)
    check(head_causal(x8), _reference(x8, w_q, w_k, w_v, mask=True),
          "self/mask/B=8", 2e-3, 2e-3)

    # 5) bf16 fast path: bf16 MXU operands everywhere, f32 accumulation / softmax
    wqb, wkb, wvb = (w.astype(jnp.bfloat16) for w in (w_q, w_k, w_v))
    head_bf16 = AttentionHeadPallas(wqb, wkb, wvb, mask=True)
    check(head_bf16(x8.astype(jnp.bfloat16)),
          _reference(x8.astype(jnp.bfloat16), wqb, wkb, wvb, mask=True),
          "self/mask/bf16", 3e-2, 3e-2)

    print("KERNEL_OK")
</pallas_src>

<mosaic_0001>
module attributes {stable_mosaic.version = 11 : i64} {
  func.func @_self_attn_kernel(%arg0: i32, %arg1: memref<2x128x256xf32, #tpu.memory_space<vmem>>, %arg2: memref<256x192xf32, #tpu.memory_space<vmem>>, %arg3: memref<2x128x64xf32, #tpu.memory_space<vmem>>) attributes {dimension_semantics = [#tpu.dimension_semantics<parallel>], iteration_bounds = array<i64: 1>, scalar_prefetch = 0 : i64, scratch_operands = 0 : i64, tpu.core_type = #tpu.core_type<tc>, window_params = [{transform_indices = @transform_0, window_bounds = array<i64: 2, 128, 256>}, {pipeline_mode = #tpu.pipeline_mode<synchronous>, transform_indices = @transform_1, window_bounds = array<i64: 256, 192>}, {transform_indices = @transform_2, window_bounds = array<i64: 2, 128, 64>}]} {
    %c0 = arith.constant 0 : index
    %c0_0 = arith.constant 0 : index
    %c0_1 = arith.constant 0 : index
    %0 = vector.load %arg1[%c0, %c0_0, %c0_1] : memref<2x128x256xf32, #tpu.memory_space<vmem>>, vector<2x128x256xf32>
    %1 = vector.shape_cast %0 : vector<2x128x256xf32> to vector<256x256xf32>
    %c0_2 = arith.constant 0 : index
    %c0_3 = arith.constant 0 : index
    %2 = vector.load %arg2[%c0_2, %c0_3] : memref<256x192xf32, #tpu.memory_space<vmem>>, vector<256x192xf32>
    %cst = arith.constant dense<0.000000e+00> : vector<256x192xf32>
    %3 = tpu.matmul %1, %2, %cst {dimension_numbers = #tpu.dot_dimension_numbers<[1], [0], [0], [1], [0, 0, 1, 1], [], []>} : vector<256x256xf32>, vector<256x192xf32>, vector<256x192xf32> -> vector<256x192xf32>
    %4 = vector.shape_cast %3 : vector<256x192xf32> to vector<2x128x192xf32>
    %5 = vector.extract_strided_slice %4 {offsets = [0, 0, 0], sizes = [2, 128, 64], strides = [1, 1, 1]} : vector<2x128x192xf32> to vector<2x128x64xf32>
    %cst_4 = arith.constant 6.250000e-02 : f32
    %6 = vector.broadcast %cst_4 : f32 to vector<2x128x64xf32>
    %7 = arith.mulf %5, %6 : vector<2x128x64xf32>
    %8 = vector.extract_strided_slice %4 {offsets = [0, 0, 64], sizes = [2, 128, 64], strides = [1, 1, 1]} : vector<2x128x192xf32> to vector<2x128x64xf32>
    %9 = vector.extract_strided_slice %4 {offsets = [0, 0, 128], sizes = [2, 128, 64], strides = [1, 1, 1]} : vector<2x128x192xf32> to vector<2x128x64xf32>
    "tpu.trace_start"() <{level = 10 : i32, message = "bqh,bkh->bqk"}> : () -> ()
    %cst_5 = arith.constant dense<0.000000e+00> : vector<2x128x128xf32>
    %10 = tpu.matmul %7, %8, %cst_5 {dimension_numbers = #tpu.dot_dimension_numbers<[2], [2], [1], [1], [0, 0, 0, 1, 1, 1], [0], [0]>} : vector<2x128x64xf32>, vector<2x128x64xf32>, vector<2x128x128xf32> -> vector<2x128x128xf32>
    "tpu.trace_stop"() : () -> ()
    %cst_6 = arith.constant dense<0xFF800000> : vector<2x128xf32>
    %11 = vector.multi_reduction <maximumf>, %10, %cst_6 [2] : vector<2x128x128xf32> to vector<2x128xf32>
    %12 = vector.shape_cast %11 : vector<2x128xf32> to vector<2x128x1xf32>
    %13 = vector.broadcast %12 : vector<2x128x1xf32> to vector<2x128x128xf32>
    %14 = arith.subf %10, %13 : vector<2x128x128xf32>
    %15 = math.exp %14 : vector<2x128x128xf32>
    %cst_7 = arith.constant dense<0.000000e+00> : vector<2x128xf32>
    %16 = vector.multi_reduction <add>, %15, %cst_7 [2] : vector<2x128x128xf32> to vector<2x128xf32>
    %17 = vector.shape_cast %16 : vector<2x128xf32> to vector<2x128x1xf32>
    "tpu.trace_start"() <{level = 10 : i32, message = "bqk,bkh->bqh"}> : () -> ()
    %cst_8 = arith.constant dense<0.000000e+00> : vector<2x128x64xf32>
    %18 = tpu.matmul %15, %9, %cst_8 {dimension_numbers = #tpu.dot_dimension_numbers<[2], [1], [1], [2], [0, 0, 0, 1, 1, 2], [0], [0]>} : vector<2x128x128xf32>, vector<2x128x64xf32>, vector<2x128x64xf32> -> vector<2x128x64xf32>
    "tpu.trace_stop"() : () -> ()
    %cst_9 = arith.constant 1.000000e+00 : f32
    %19 = vector.broadcast %cst_9 : f32 to vector<2x128x1xf32>
    %20 = arith.divf %19, %17 : vector<2x128x1xf32>
    %21 = vector.broadcast %20 : vector<2x128x1xf32> to vector<2x128x64xf32>
    %22 = arith.mulf %18, %21 : vector<2x128x64xf32>
    %c0_10 = arith.constant 0 : index
    %c0_11 = arith.constant 0 : index
    %c0_12 = arith.constant 0 : index
    %23 = vector.load %arg3[%c0_10, %c0_11, %c0_12] : memref<2x128x64xf32, #tpu.memory_space<vmem>>, vector<2x128x64xf32>
    tpu.vector_store %arg3[%c0_10, %c0_11, %c0_12], %22 {strides = array<i32>} : memref<2x128x64xf32, #tpu.memory_space<vmem>>, vector<2x128x64xf32>,
    return
  }
  func.func @transform_0(%arg0: i32) -> (i32, i32, i32) {
    %c0_i32 = arith.constant 0 : i32
    %c0_i32_0 = arith.constant 0 : i32
    %c0_i32_1 = arith.constant 0 : i32
    return %arg0, %c0_i32, %c0_i32_0 : i32, i32, i32
  }
  func.func @transform_1(%arg0: i32) -> (i32, i32) {
    %c0_i32 = arith.constant 0 : i32
    %c0_i32_0 = arith.constant 0 : i32
    %c0_i32_1 = arith.constant 0 : i32
    return %c0_i32, %c0_i32_0 : i32, i32
  }
  func.func @transform_2(%arg0: i32) -> (i32, i32, i32) {
    %c0_i32 = arith.constant 0 : i32
    %c0_i32_0 = arith.constant 0 : i32
    %c0_i32_1 = arith.constant 0 : i32
    return %arg0, %c0_i32, %c0_i32_0 : i32, i32, i32
  }
}

</mosaic_0001>

<llo_original>
// kernel: tpu_custom_call.1
$region0: #{tpu_custom_call.1}
  #allocation0 [shape = 'u32[]', space=smem, size = 0x4, offset = 0x4, fixed_abs, tag = 'smem constant byte address 0x4 - core index']
  #allocation1 [shape = 'u32[72,128]{1,0:T(1,128)}', space=vmem, size = 0x9000, scoped, tag = 'internal scratch']
  %s0 = inlined_call_operand.vmem [shape: f32[2,128,256], index: 0, kind: input, shape index: {}]
  %s1 = inlined_call_operand.vmem [shape: f32[256,192], index: 1, kind: input, shape index: {}]
  %s2 = inlined_call_operand.vmem [shape: f32[2,128,64], index: 2, kind: output, shape index: {}]
  %s3 = sld [smem:[#allocation0]]
  $region18: #{tpu_custom_call.1} parent=0
    _
  %s5 = ssub.s32 1, %s3
  %s6 = scalar_select 0, %s5, %s3
  // Predicated region
  $region2: #{tpu_custom_call.1} parent=0 // pred_check
    _
  $region3: #{tpu_custom_call.1} parent=0 // pred_check_branch
    %8 = sbr.rel (0) target = $region5
  $region4: #{tpu_custom_call.1} parent=0 // pred_region
    _
  $region5: #{tpu_custom_call.1} parent=0 // pred_fallthru
    _
  // Predicated region
  $region6: #{tpu_custom_call.1} parent=0 // pred_check
    _
  $region7: #{tpu_custom_call.1} parent=0 // pred_check_branch
    %10 = sbr.rel (0) target = $region9
  $region8: #{tpu_custom_call.1} parent=0 // pred_region
    _
  $region9: #{tpu_custom_call.1} parent=0 // pred_fallthru
    _
  %v11 = vld [vmem:[%s0] sm:$0xff]
  %v12 = vld [vmem:[%s0 + $0x8] sm:$0xff]
  %v13 = vld [vmem:[%s0 + $0x10] sm:$0xff]
  %v14 = vld [vmem:[%s0 + $0x18] sm:$0xff]
  %v15 = vld [vmem:[%s0 + $0x20] sm:$0xff]
  %v16 = vld [vmem:[%s0 + $0x28] sm:$0xff]
  %v17 = vld [vmem:[%s0 + $0x30] sm:$0xff]
  %v18 = vld [vmem:[%s0 + $0x38] sm:$0xff]
  %v19 = vld [vmem:[%s0 + $0x40] sm:$0xff]
  %v20 = vld [vmem:[%s0 + $0x48] sm:$0xff]
  %v21 = vld [vmem:[%s0 + $0x50] sm:$0xff]
  %v22 = vld [vmem:[%s0 + $0x58] sm:$0xff]
  %v23 = vld [vmem:[%s0 + $0x60] sm:$0xff]
  %v24 = vld [vmem:[%s0 + $0x68] sm:$0xff]
  %v25 = vld [vmem:[%s0 + $0x70] sm:$0xff]
  %v26 = vld [vmem:[%s0 + $0x78] sm:$0xff]
  %v27 = vld [vmem:[%s0 + $0x80] sm:$0xff]
  %v28 = vld [vmem:[%s0 + $0x88] sm:$0xff]
  %v29 = vld [vmem:[%s0 + $0x90] sm:$0xff]
  %v30 = vld [vmem:[%s0 + $0x98] sm:$0xff]
  %v31 = vld [vmem:[%s0 + $0xa0] sm:$0xff]
  %v32 = vld [vmem:[%s0 + $0xa8] sm:$0xff]
  %v33 = vld [vmem:[%s0 + $0xb0] sm:$0xff]
  %v34 = vld [vmem:[%s0 + $0xb8] sm:$0xff]
  %v35 = vld [vmem:[%s0 + $0xc0] sm:$0xff]
  %v36 = vld [vmem:[%s0 + $0xc8] sm:$0xff]
  %v37 = vld [vmem:[%s0 + $0xd0] sm:$0xff]
  %v38 = vld [vmem:[%s0 + $0xd8] sm:$0xff]
  %v39 = vld [vmem:[%s0 + $0xe0] sm:$0xff]
  %v40 = vld [vmem:[%s0 + $0xe8] sm:$0xff]
  %v41 = vld [vmem:[%s0 + $0xf0] sm:$0xff]
  %v42 = vld [vmem:[%s0 + $0xf8] sm:$0xff]
  %v43 = vld [vmem:[%s0 + $0x100] sm:$0xff]
  %v44 = vld [vmem:[%s0 + $0x108] sm:$0xff]
  %v45 = vld [vmem:[%s0 + $0x110] sm:$0xff]
  %v46 = vld [vmem:[%s0 + $0x118] sm:$0xff]
  %v47 = vld [vmem:[%s0 + $0x120] sm:$0xff]
  %v48 = vld [vmem:[%s0 + $0x128] sm:$0xff]
  %v49 = vld [vmem:[%s0 + $0x130] sm:$0xff]
  %v50 = vld [vmem:[%s0 + $0x138] sm:$0xff]
  %v51 = vld [vmem:[%s0 + $0x140] sm:$0xff]
  %v52 = vld [vmem:[%s0 + $0x148] sm:$0xff]
  %v53 = vld [vmem:[%s0 + $0x150] sm:$0xff]
  %v54 = vld [vmem:[%s0 + $0x158] sm:$0xff]
  %v55 = vld [vmem:[%s0 + $0x160] sm:$0xff]
  %v56 = vld [vmem:[%s0 + $0x168] sm:$0xff]
  %v57 = vld [vmem:[%s0 + $0x170] sm:$0xff]
  %v58 = vld [vmem:[%s0 + $0x178] sm:$0xff]
  %v59 = vld [vmem:[%s0 + $0x180] sm:$0xff]
  %v60 = vld [vmem:[%s0 + $0x188] sm:$0xff]
  %v61 = vld [vmem:[%s0 + $0x190] sm:$0xff]
  %v62 = vld [vmem:[%s0 + $0x198] sm:$0xff]
  %v63 = vld [vmem:[%s0 + $0x1a0] sm:$0xff]
  %v64 = vld [vmem:[%s0 + $0x1a8] sm:$0xff]
  %v65 = vld [vmem:[%s0 + $0x1b0] sm:$0xff]
  %v66 = vld [vmem:[%s0 + $0x1b8] sm:$0xff]
  %v67 = vld [vmem:[%s0 + $0x1c0] sm:$0xff]
  %v68 = vld [vmem:[%s0 + $0x1c8] sm:$0xff]
  %v69 = vld [vmem:[%s0 + $0x1d0] sm:$0xff]
  %v70 = vld [vmem:[%s0 + $0x1d8] sm:$0xff]
  %v71 = vld [vmem:[%s0 + $0x1e0] sm:$0xff]
  %v72 = vld [vmem:[%s0 + $0x1e8] sm:$0xff]
  %v73 = vld [vmem:[%s0 + $0x1f0] sm:$0xff]
  %v74 = vld [vmem:[%s0 + $0x1f8] sm:$0xff]
  %v75 = vld [vmem:[%s1] sm:$0xff]
  %v76 = vld [vmem:[%s1 + $0x8] sm:$0xff]
  %v77 = vld [vmem:[%s1 + $0x10] sm:$0xff]
  %v78 = vld [vmem:[%s1 + $0x18] sm:$0xff]
  %v79 = vld [vmem:[%s1 + $0x20] sm:$0xff]
  %v80 = vld [vmem:[%s1 + $0x28] sm:$0xff]
  %v81 = vld [vmem:[%s1 + $0x30] sm:$0xff]
  %v82 = vld [vmem:[%s1 + $0x38] sm:$0xff]
  %v83 = vld [vmem:[%s1 + $0x40] sm:$0xff]
  %v84 = vld [vmem:[%s1 + $0x48] sm:$0xff]
  %v85 = vld [vmem:[%s1 + $0x50] sm:$0xff]
  %v86 = vld [vmem:[%s1 + $0x58] sm:$0xff]
  %v87 = vld [vmem:[%s1 + $0x60] sm:$0xff]
  %v88 = vld [vmem:[%s1 + $0x68] sm:$0xff]
  %v89 = vld [vmem:[%s1 + $0x70] sm:$0xff]
  %v90 = vld [vmem:[%s1 + $0x78] sm:$0xff]
  %v91 = vld [vmem:[%s1 + $0x80] sm:$0xff]
  %v92 = vld [vmem:[%s1 + $0x88] sm:$0xff]
  %v93 = vld [vmem:[%s1 + $0x90] sm:$0xff]
  %v94 = vld [vmem:[%s1 + $0x98] sm:$0xff]
  %v95 = vld [vmem:[%s1 + $0xa0] sm:$0xff]
  %v96 = vld [vmem:[%s1 + $0xa8] sm:$0xff]
  %v97 = vld [vmem:[%s1 + $0xb0] sm:$0xff]
  %v98 = vld [vmem:[%s1 + $0xb8] sm:$0xff]
  %v99 = vld [vmem:[%s1 + $0xc0] sm:$0xff]
  %v100 = vld [vmem:[%s1 + $0xc8] sm:$0xff]
  %v101 = vld [vmem:[%s1 + $0xd0] sm:$0xff]
  %v102 = vld [vmem:[%s1 + $0xd8] sm:$0xff]
  %v103 = vld [vmem:[%s1 + $0xe0] sm:$0xff]
  %v104 = vld [vmem:[%s1 + $0xe8] sm:$0xff]
  %v105 = vld [vmem:[%s1 + $0xf0] sm:$0xff]
  %v106 = vld [vmem:[%s1 + $0xf8] sm:$0xff]
  %v107 = vld [vmem:[%s1 + $0x100] sm:$0xff]
  %v108 = vld [vmem:[%s1 + $0x108] sm:$0xff]
  %v109 = vld [vmem:[%s1 + $0x110] sm:$0xff]
  %v110 = vld [vmem:[%s1 + $0x118] sm:$0xff]
  %v111 = vld [vmem:[%s1 + $0x120] sm:$0xff]
  %v112 = vld [vmem:[%s1 + $0x128] sm:$0xff]
  %v113 = vld [vmem:[%s1 + $0x130] sm:$0xff]
  %v114 = vld [vmem:[%s1 + $0x138] sm:$0xff]
  %v115 = vld [vmem:[%s1 + $0x140] sm:$0xff]
  %v116 = vld [vmem:[%s1 + $0x148] sm:$0xff]
  %v117 = vld [vmem:[%s1 + $0x150] sm:$0xff]
  %v118 = vld [vmem:[%s1 + $0x158] sm:$0xff]
  %v119 = vld [vmem:[%s1 + $0x160] sm:$0xff]
  %v120 = vld [vmem:[%s1 + $0x168] sm:$0xff]
  %v121 = vld [vmem:[%s1 + $0x170] sm:$0xff]
  %v122 = vld [vmem:[%s1 + $0x178] sm:$0xff]
  %v123 = vld [vmem:[%s1 + $0x180] sm:$0xff]
  %v124 = vld [vmem:[%s1 + $0x188] sm:$0xff]
  %v125 = vld [vmem:[%s1 + $0x190] sm:$0xff]
  %v126 = vld [vmem:[%s1 + $0x198] sm:$0xff]
  %v127 = vld [vmem:[%s1 + $0x1a0] sm:$0xff]
  %v128 = vld [vmem:[%s1 + $0x1a8] sm:$0xff]
  %v129 = vld [vmem:[%s1 + $0x1b0] sm:$0xff]
  %v130 = vld [vmem:[%s1 + $0x1b8] sm:$0xff]
  %v131 = vld [vmem:[%s1 + $0x1c0] sm:$0xff]
  %v132 = vld [vmem:[%s1 + $0x1c8] sm:$0xff]
  %v133 = vld [vmem:[%s1 + $0x1d0] sm:$0xff]
  %v134 = vld [vmem:[%s1 + $0x1d8] sm:$0xff]
  %v135 = vld [vmem:[%s1 + $0x1e0] sm:$0xff]
  %v136 = vld [vmem:[%s1 + $0x1e8] sm:$0xff]
  %v137 = vld [vmem:[%s1 + $0x1f0] sm:$0xff]
  %v138 = vld [vmem:[%s1 + $0x1f8] sm:$0xff]
  %139 = vmatpush.msra.mxu0 %v105
  %140 = vmatpush.msra.mxu0 %v103
  %141 = vmatpush.msra.mxu0 %v101
  %142 = vmatpush.msra.mxu0 %v99
  %143 = vmatpush.msra.mxu0 %v97
  %144 = vmatpush.msra.mxu0 %v95
  %145 = vmatpush.msra.mxu0 %v93
  %146 = vmatpush.msra.mxu0 %v91
  %147 = vmatpush.msra.mxu0 %v89
  %148 = vmatpush.msra.mxu0 %v87
  %149 = vmatpush.msra.mxu0 %v85
  %150 = vmatpush.msra.mxu0 %v83
  %151 = vmatpush.msra.mxu0 %v81
  %152 = vmatpush.msra.mxu0 %v79
  %153 = vmatpush.msra.mxu0 %v77
  %154 = vmatpush.msra.mxu0 %v75
  %155 = vmatmul.f32.gmra.mxu0 %v11
  %v156 = vpop.f32.mrf.mxu0
  %v157 = vadd.f32 0.0, %v156
  %158 = vmatmul.f32.gmra.mxu0 %v13
  %v159 = vpop.f32.mrf.mxu0
  %v160 = vadd.f32 0.0, %v159
  %161 = vmatmul.f32.gmra.mxu0 %v15
  %v162 = vpop.f32.mrf.mxu0
  %v163 = vadd.f32 0.0, %v162
  %164 = vmatmul.f32.gmra.mxu0 %v17
  %v165 = vpop.f32.mrf.mxu0
  %v166 = vadd.f32 0.0, %v165
  %167 = vmatmul.f32.gmra.mxu0 %v19
  %v168 = vpop.f32.mrf.mxu0
  %v169 = vadd.f32 0.0, %v168
  %170 = vmatmul.f32.gmra.mxu0 %v21
  %v171 = vpop.f32.mrf.mxu0
  %v172 = vadd.f32 0.0, %v171
  %173 = vmatmul.f32.gmra.mxu0 %v23
  %v174 = vpop.f32.mrf.mxu0
  %v175 = vadd.f32 0.0, %v174
  %176 = vmatmul.f32.gmra.mxu0 %v25
  %v177 = vpop.f32.mrf.mxu0
  %v178 = vadd.f32 0.0, %v177
  %179 = vmatmul.f32.gmra.mxu0 %v27
  %v180 = vpop.f32.mrf.mxu0
  %v181 = vadd.f32 0.0, %v180
  %182 = vmatmul.f32.gmra.mxu0 %v29
  %v183 = vpop.f32.mrf.mxu0
  %v184 = vadd.f32 0.0, %v183
  %185 = vmatmul.f32.gmra.mxu0 %v31
  %v186 = vpop.f32.mrf.mxu0
  %v187 = vadd.f32 0.0, %v186
  %188 = vmatmul.f32.gmra.mxu0 %v33
  %v189 = vpop.f32.mrf.mxu0
  %v190 = vadd.f32 0.0, %v189
  %191 = vmatmul.f32.gmra.mxu0 %v35
  %v192 = vpop.f32.mrf.mxu0
  %v193 = vadd.f32 0.0, %v192
  %194 = vmatmul.f32.gmra.mxu0 %v37
  %v195 = vpop.f32.mrf.mxu0
  %v196 = vadd.f32 0.0, %v195
  %197 = vmatmul.f32.gmra.mxu0 %v39
  %v198 = vpop.f32.mrf.mxu0
  %v199 = vadd.f32 0.0, %v198
  %200 = vmatmul.f32.gmra.mxu0 %v41
  %v201 = vpop.f32.mrf.mxu0
  %v202 = vadd.f32 0.0, %v201
  %203 = vmatmul.f32.gmra.mxu0 %v43
  %v204 = vpop.f32.mrf.mxu0
  %v205 = vadd.f32 0.0, %v204
  %206 = vmatmul.f32.gmra.mxu0 %v45
  %v207 = vpop.f32.mrf.mxu0
  %v208 = vadd.f32 0.0, %v207
  %209 = vmatmul.f32.gmra.mxu0 %v47
  %v210 = vpop.f32.mrf.mxu0
  %v211 = vadd.f32 0.0, %v210
  %212 = vmatmul.f32.gmra.mxu0 %v49
  %v213 = vpop.f32.mrf.mxu0
  %v214 = vadd.f32 0.0, %v213
  %215 = vmatmul.f32.gmra.mxu0 %v51
  %v216 = vpop.f32.mrf.mxu0
  %v217 = vadd.f32 0.0, %v216
  %218 = vmatmul.f32.gmra.mxu0 %v53
  %v219 = vpop.f32.mrf.mxu0
  %v220 = vadd.f32 0.0, %v219
  %221 = vmatmul.f32.gmra.mxu0 %v55
  %v222 = vpop.f32.mrf.mxu0
  %v223 = vadd.f32 0.0, %v222
  %224 = vmatmul.f32.gmra.mxu0 %v57
  %v225 = vpop.f32.mrf.mxu0
  %v226 = vadd.f32 0.0, %v225
  %227 = vmatmul.f32.gmra.mxu0 %v59
  %v228 = vpop.f32.mrf.mxu0
  %v229 = vadd.f32 0.0, %v228
  %230 = vmatmul.f32.gmra.mxu0 %v61
  %v231 = vpop.f32.mrf.mxu0
  %v232 = vadd.f32 0.0, %v231
  %233 = vmatmul.f32.gmra.mxu0 %v63
  %v234 = vpop.f32.mrf.mxu0
  %v235 = vadd.f32 0.0, %v234
  %236 = vmatmul.f32.gmra.mxu0 %v65
  %v237 = vpop.f32.mrf.mxu0
  %v238 = vadd.f32 0.0, %v237
  %239 = vmatmul.f32.gmra.mxu0 %v67
  %v240 = vpop.f32.mrf.mxu0
  %v241 = vadd.f32 0.0, %v240
  %242 = vmatmul.f32.gmra.mxu0 %v69
  %v243 = vpop.f32.mrf.mxu0
  %v244 = vadd.f32 0.0, %v243
  %245 = vmatmul.f32.gmra.mxu0 %v71
  %v246 = vpop.f32.mrf.mxu0
  %v247 = vadd.f32 0.0, %v246
  %248 = vmatmul.f32.gmra.mxu0 %v73
  %v249 = vpop.f32.mrf.mxu0
  %v250 = vadd.f32 0.0, %v249
  %251 = vdwg.mxu0
  %252 = vmatpush.msra.mxu0 %v137
  %253 = vmatpush.msra.mxu0 %v135
  %254 = vmatpush.msra.mxu0 %v133
  %255 = vmatpush.msra.mxu0 %v131
  %256 = vmatpush.msra.mxu0 %v129
  %257 = vmatpush.msra.mxu0 %v127
  %258 = vmatpush.msra.mxu0 %v125
  %259 = vmatpush.msra.mxu0 %v123
  %260 = vmatpush.msra.mxu0 %v121
  %261 = vmatpush.msra.mxu0 %v119
  %262 = vmatpush.msra.mxu0 %v117
  %263 = vmatpush.msra.mxu0 %v115
  %264 = vmatpush.msra.mxu0 %v113
  %265 = vmatpush.msra.mxu0 %v111
  %266 = vmatpush.msra.mxu0 %v109
  %267 = vmatpush.msra.mxu0 %v107
  %268 = vmatmul.f32.gmra.mxu0 %v12
  %v269 = vpop.f32.mrf.mxu0
  %v270 = vadd.f32 %v157, %v269
  %271 = vmatmul.f32.gmra.mxu0 %v14
  %v272 = vpop.f32.mrf.mxu0
  %v273 = vadd.f32 %v160, %v272
  %274 = vmatmul.f32.gmra.mxu0 %v16
  %v275 = vpop.f32.mrf.mxu0
  %v276 = vadd.f32 %v163, %v275
  %277 = vmatmul.f32.gmra.mxu0 %v18
  %v278 = vpop.f32.mrf.mxu0
  %v279 = vadd.f32 %v166, %v278
  %280 = vmatmul.f32.gmra.mxu0 %v20
  %v281 = vpop.f32.mrf.mxu0
  %v282 = vadd.f32 %v169, %v281
  %283 = vmatmul.f32.gmra.mxu0 %v22
  %v284 = vpop.f32.mrf.mxu0
  %v285 = vadd.f32 %v172, %v284
  %286 = vmatmul.f32.gmra.mxu0 %v24
  %v287 = vpop.f32.mrf.mxu0
  %v288 = vadd.f32 %v175, %v287
  %289 = vmatmul.f32.gmra.mxu0 %v26
  %v290 = vpop.f32.mrf.mxu0
  %v291 = vadd.f32 %v178, %v290
  %292 = vmatmul.f32.gmra.mxu0 %v28
  %v293 = vpop.f32.mrf.mxu0
  %v294 = vadd.f32 %v181, %v293
  %295 = vmatmul.f32.gmra.mxu0 %v30
  %v296 = vpop.f32.mrf.mxu0
  %v297 = vadd.f32 %v184, %v296
  %298 = vmatmul.f32.gmra.mxu0 %v32
  %v299 = vpop.f32.mrf.mxu0
  %v300 = vadd.f32 %v187, %v299
  %301 = vmatmul.f32.gmra.mxu0 %v34
  %v302 = vpop.f32.mrf.mxu0
  %v303 = vadd.f32 %v190, %v302
  %304 = vmatmul.f32.gmra.mxu0 %v36
  %v305 = vpop.f32.mrf.mxu0
  %v306 = vadd.f32 %v193, %v305
  %307 = vmatmul.f32.gmra.mxu0 %v38
  %v308 = vpop.f32.mrf.mxu0
  %v309 = vadd.f32 %v196, %v308
  %310 = vmatmul.f32.gmra.mxu0 %v40
  %v311 = vpop.f32.mrf.mxu0
  %v312 = vadd.f32 %v199, %v311
  %313 = vmatmul.f32.gmra.mxu0 %v42
  %v314 = vpop.f32.mrf.mxu0
  %v315 = vadd.f32 %v202, %v314
  %316 = vmatmul.f32.gmra.mxu0 %v44
  %v317 = vpop.f32.mrf.mxu0
  %v318 = vadd.f32 %v205, %v317
  %319 = vmatmul.f32.gmra.mxu0 %v46
  %v320 = vpop.f32.mrf.mxu0
  %v321 = vadd.f32 %v208, %v320
  %322 = vmatmul.f32.gmra.mxu0 %v48
  %v323 = vpop.f32.mrf.mxu0
  %v324 = vadd.f32 %v211, %v323
  %325 = vmatmul.f32.gmra.mxu0 %v50
  %v326 = vpop.f32.mrf.mxu0
  %v327 = vadd.f32 %v214, %v326
  %328 = vmatmul.f32.gmra.mxu0 %v52
  %v329 = vpop.f32.mrf.mxu0
  %v330 = vadd.f32 %v217, %v329
  %331 = vmatmul.f32.gmra.mxu0 %v54
  %v332 = vpop.f32.mrf.mxu0
  %v333 = vadd.f32 %v220, %v332
  %334 = vmatmul.f32.gmra.mxu0 %v56
  %v335 = vpop.f32.mrf.mxu0
  %v336 = vadd.f32 %v223, %v335
  %337 = vmatmul.f32.gmra.mxu0 %v58
  %v338 = vpop.f32.mrf.mxu0
  %v339 = vadd.f32 %v226, %v338
  %340 = vmatmul.f32.gmra.mxu0 %v60
  %v341 = vpop.f32.mrf.mxu0
  %v342 = vadd.f32 %v229, %v341
  %343 = vmatmul.f32.gmra.mxu0 %v62
  %v344 = vpop.f32.mrf.mxu0
  %v345 = vadd.f32 %v232, %v344
  %346 = vmatmul.f32.gmra.mxu0 %v64
  %v347 = vpop.f32.mrf.mxu0
  %v348 = vadd.f32 %v235, %v347
  %349 = vmatmul.f32.gmra.mxu0 %v66
  %v350 = vpop.f32.mrf.mxu0
  %v351 = vadd.f32 %v238, %v350
  %352 = vmatmul.f32.gmra.mxu0 %v68
  %v353 = vpop.f32.mrf.mxu0
  %v354 = vadd.f32 %v241, %v353
  %355 = vmatmul.f32.gmra.mxu0 %v70
  %v356 = vpop.f32.mrf.mxu0
  %v357 = vadd.f32 %v244, %v356
  %358 = vmatmul.f32.gmra.mxu0 %v72
  %v359 = vpop.f32.mrf.mxu0
  %v360 = vadd.f32 %v247, %v359
  %361 = vmatmul.f32.gmra.mxu0 %v74
  %v362 = vpop.f32.mrf.mxu0
  %v363 = vadd.f32 %v250, %v362
  %364 = vdwg.mxu0
  %365 = vmatpush.msra.mxu0 %v106
  %366 = vmatpush.msra.mxu0 %v104
  %367 = vmatpush.msra.mxu0 %v102
  %368 = vmatpush.msra.mxu0 %v100
  %369 = vmatpush.msra.mxu0 %v98
  %370 = vmatpush.msra.mxu0 %v96
  %371 = vmatpush.msra.mxu0 %v94
  %372 = vmatpush.msra.mxu0 %v92
  %373 = vmatpush.msra.mxu0 %v90
  %374 = vmatpush.msra.mxu0 %v88
  %375 = vmatpush.msra.mxu0 %v86
  %376 = vmatpush.msra.mxu0 %v84
  %377 = vmatpush.msra.mxu0 %v82
  %378 = vmatpush.msra.mxu0 %v80
  %379 = vmatpush.msra.mxu0 %v78
  %380 = vmatpush.msra.mxu0 %v76
  %381 = vmatmul.f32.gmra.mxu0 %v11
  %v382 = vpop.f32.mrf.mxu0
  %v383 = vadd.f32 0.0, %v382
  %384 = vmatmul.f32.gmra.mxu0 %v13
  %v385 = vpop.f32.mrf.mxu0
  %v386 = vadd.f32 0.0, %v385
  %387 = vmatmul.f32.gmra.mxu0 %v15
  %v388 = vpop.f32.mrf.mxu0
  %v389 = vadd.f32 0.0, %v388
  %390 = vmatmul.f32.gmra.mxu0 %v17
  %v391 = vpop.f32.mrf.mxu0
  %v392 = vadd.f32 0.0, %v391
  %393 = vmatmul.f32.gmra.mxu0 %v19
  %v394 = vpop.f32.mrf.mxu0
  %v395 = vadd.f32 0.0, %v394
  %396 = vmatmul.f32.gmra.mxu0 %v21
  %v397 = vpop.f32.mrf.mxu0
  %v398 = vadd.f32 0.0, %v397
  %399 = vmatmul.f32.gmra.mxu0 %v23
  %v400 = vpop.f32.mrf.mxu0
  %v401 = vadd.f32 0.0, %v400
  %402 = vmatmul.f32.gmra.mxu0 %v25
  %v403 = vpop.f32.mrf.mxu0
  %v404 = vadd.f32 0.0, %v403
  %405 = vmatmul.f32.gmra.mxu0 %v27
  %v406 = vpop.f32.mrf.mxu0
  %v407 = vadd.f32 0.0, %v406
  %408 = vmatmul.f32.gmra.mxu0 %v29
  %v409 = vpop.f32.mrf.mxu0
  %v410 = vadd.f32 0.0, %v409
  %411 = vmatmul.f32.gmra.mxu0 %v31
  %v412 = vpop.f32.mrf.mxu0
  %v413 = vadd.f32 0.0, %v412
  %414 = vmatmul.f32.gmra.mxu0 %v33
  %v415 = vpop.f32.mrf.mxu0
  %v416 = vadd.f32 0.0, %v415
  %417 = vmatmul.f32.gmra.mxu0 %v35
  %v418 = vpop.f32.mrf.mxu0
  %v419 = vadd.f32 0.0, %v418
  %420 = vmatmul.f32.gmra.mxu0 %v37
  %v421 = vpop.f32.mrf.mxu0
  %v422 = vadd.f32 0.0, %v421
  %423 = vmatmul.f32.gmra.mxu0 %v39
  %v424 = vpop.f32.mrf.mxu0
  %v425 = vadd.f32 0.0, %v424
  %426 = vmatmul.f32.gmra.mxu0 %v41
  %v427 = vpop.f32.mrf.mxu0
  %v428 = vadd.f32 0.0, %v427
  %429 = vmatmul.f32.gmra.mxu0 %v43
  %v430 = vpop.f32.mrf.mxu0
  %v431 = vadd.f32 0.0, %v430
  %432 = vmatmul.f32.gmra.mxu0 %v45
  %v433 = vpop.f32.mrf.mxu0
  %v434 = vadd.f32 0.0, %v433
  %435 = vmatmul.f32.gmra.mxu0 %v47
  %v436 = vpop.f32.mrf.mxu0
  %v437 = vadd.f32 0.0, %v436
  %438 = vmatmul.f32.gmra.mxu0 %v49
  %v439 = vpop.f32.mrf.mxu0
  %v440 = vadd.f32 0.0, %v439
  %441 = vmatmul.f32.gmra.mxu0 %v51
  %v442 = vpop.f32.mrf.mxu0
  %v443 = vadd.f32 0.0, %v442
  %444 = vmatmul.f32.gmra.mxu0 %v53
  %v445 = vpop.f32.mrf.mxu0
  %v446 = vadd.f32 0.0, %v445
  %447 = vmatmul.f32.gmra.mxu0 %v55
  %v448 = vpop.f32.mrf.mxu0
  %v449 = vadd.f32 0.0, %v448
  %450 = vmatmul.f32.gmra.mxu0 %v57
  %v451 = vpop.f32.mrf.mxu0
  %v452 = vadd.f32 0.0, %v451
  %453 = vmatmul.f32.gmra.mxu0 %v59
  %v454 = vpop.f32.mrf.mxu0
  %v455 = vadd.f32 0.0, %v454
  %456 = vmatmul.f32.gmra.mxu0 %v61
  %v457 = vpop.f32.mrf.mxu0
  %v458 = vadd.f32 0.0, %v457
  %459 = vmatmul.f32.gmra.mxu0 %v63
  %v460 = vpop.f32.mrf.mxu0
  %v461 = vadd.f32 0.0, %v460
  %462 = vmatmul.f32.gmra.mxu0 %v65
  %v463 = vpop.f32.mrf.mxu0
  %v464 = vadd.f32 0.0, %v463
  %465 = vmatmul.f32.gmra.mxu0 %v67
  %v466 = vpop.f32.mrf.mxu0
  %v467 = vadd.f32 0.0, %v466
  %468 = vmatmul.f32.gmra.mxu0 %v69
  %v469 = vpop.f32.mrf.mxu0
  %v470 = vadd.f32 0.0, %v469
  %471 = vmatmul.f32.gmra.mxu0 %v71
  %v472 = vpop.f32.mrf.mxu0
  %v473 = vadd.f32 0.0, %v472
  %474 = vmatmul.f32.gmra.mxu0 %v73
  %v475 = vpop.f32.mrf.mxu0
  %v476 = vadd.f32 0.0, %v475
  %477 = vdwg.mxu0
  %478 = vmatpush.msra.mxu0 %v138
  %479 = vmatpush.msra.mxu0 %v136
  %480 = vmatpush.msra.mxu0 %v134
  %481 = vmatpush.msra.mxu0 %v132
  %482 = vmatpush.msra.mxu0 %v130
  %483 = vmatpush.msra.mxu0 %v128
  %484 = vmatpush.msra.mxu0 %v126
  %485 = vmatpush.msra.mxu0 %v124
  %486 = vmatpush.msra.mxu0 %v122
  %487 = vmatpush.msra.mxu0 %v120
  %488 = vmatpush.msra.mxu0 %v118
  %489 = vmatpush.msra.mxu0 %v116
  %490 = vmatpush.msra.mxu0 %v114
  %491 = vmatpush.msra.mxu0 %v112
  %492 = vmatpush.msra.mxu0 %v110
  %493 = vmatpush.msra.mxu0 %v108
  %494 = vmatmul.f32.gmra.mxu0 %v12
  %v495 = vpop.f32.mrf.mxu0
  %v496 = vadd.f32 %v383, %v495
  %497 = vmatmul.f32.gmra.mxu0 %v14
  %v498 = vpop.f32.mrf.mxu0
  %v499 = vadd.f32 %v386, %v498
  %500 = vmatmul.f32.gmra.mxu0 %v16
  %v501 = vpop.f32.mrf.mxu0
  %v502 = vadd.f32 %v389, %v501
  %503 = vmatmul.f32.gmra.mxu0 %v18
  %v504 = vpop.f32.mrf.mxu0
  %v505 = vadd.f32 %v392, %v504
  %506 = vmatmul.f32.gmra.mxu0 %v20
  %v507 = vpop.f32.mrf.mxu0
  %v508 = vadd.f32 %v395, %v507
  %509 = vmatmul.f32.gmra.mxu0 %v22
  %v510 = vpop.f32.mrf.mxu0
  %v511 = vadd.f32 %v398, %v510
  %512 = vmatmul.f32.gmra.mxu0 %v24
  %v513 = vpop.f32.mrf.mxu0
  %v514 = vadd.f32 %v401, %v513
  %515 = vmatmul.f32.gmra.mxu0 %v26
  %v516 = vpop.f32.mrf.mxu0
  %v517 = vadd.f32 %v404, %v516
  %518 = vmatmul.f32.gmra.mxu0 %v28
  %v519 = vpop.f32.mrf.mxu0
  %v520 = vadd.f32 %v407, %v519
  %521 = vmatmul.f32.gmra.mxu0 %v30
  %v522 = vpop.f32.mrf.mxu0
  %v523 = vadd.f32 %v410, %v522
  %524 = vmatmul.f32.gmra.mxu0 %v32
  %v525 = vpop.f32.mrf.mxu0
  %v526 = vadd.f32 %v413, %v525
  %527 = vmatmul.f32.gmra.mxu0 %v34
  %v528 = vpop.f32.mrf.mxu0
  %v529 = vadd.f32 %v416, %v528
  %530 = vmatmul.f32.gmra.mxu0 %v36
  %v531 = vpop.f32.mrf.mxu0
  %v532 = vadd.f32 %v419, %v531
  %533 = vmatmul.f32.gmra.mxu0 %v38
  %v534 = vpop.f32.mrf.mxu0
  %v535 = vadd.f32 %v422, %v534
  %536 = vmatmul.f32.gmra.mxu0 %v40
  %v537 = vpop.f32.mrf.mxu0
  %v538 = vadd.f32 %v425, %v537
  %539 = vmatmul.f32.gmra.mxu0 %v42
  %v540 = vpop.f32.mrf.mxu0
  %v541 = vadd.f32 %v428, %v540
  %542 = vmatmul.f32.gmra.mxu0 %v44
  %v543 = vpop.f32.mrf.mxu0
  %v544 = vadd.f32 %v431, %v543
  %545 = vmatmul.f32.gmra.mxu0 %v46
  %v546 = vpop.f32.mrf.mxu0
  %v547 = vadd.f32 %v434, %v546
  %548 = vmatmul.f32.gmra.mxu0 %v48
  %v549 = vpop.f32.mrf.mxu0
  %v550 = vadd.f32 %v437, %v549
  %551 = vmatmul.f32.gmra.mxu0 %v50
  %v552 = vpop.f32.mrf.mxu0
  %v553 = vadd.f32 %v440, %v552
  %554 = vmatmul.f32.gmra.mxu0 %v52
  %v555 = vpop.f32.mrf.mxu0
  %v556 = vadd.f32 %v443, %v555
  %557 = vmatmul.f32.gmra.mxu0 %v54
  %v558 = vpop.f32.mrf.mxu0
  %v559 = vadd.f32 %v446, %v558
  %560 = vmatmul.f32.gmra.mxu0 %v56
  %v561 = vpop.f32.mrf.mxu0
  %v562 = vadd.f32 %v449, %v561
  %563 = vmatmul.f32.gmra.mxu0 %v58
  %v564 = vpop.f32.mrf.mxu0
  %v565 = vadd.f32 %v452, %v564
  %566 = vmatmul.f32.gmra.mxu0 %v60
  %v567 = vpop.f32.mrf.mxu0
  %v568 = vadd.f32 %v455, %v567
  %569 = vmatmul.f32.gmra.mxu0 %v62
  %v570 = vpop.f32.mrf.mxu0
  %v571 = vadd.f32 %v458, %v570
  %572 = vmatmul.f32.gmra.mxu0 %v64
  %v573 = vpop.f32.mrf.mxu0
  %v574 = vadd.f32 %v461, %v573
  %575 = vmatmul.f32.gmra.mxu0 %v66
  %v576 = vpop.f32.mrf.mxu0
  %v577 = vadd.f32 %v464, %v576
  %578 = vmatmul.f32.gmra.mxu0 %v68
  %v579 = vpop.f32.mrf.mxu0
  %v580 = vadd.f32 %v467, %v579
  %581 = vmatmul.f32.gmra.mxu0 %v70
  %v582 = vpop.f32.mrf.mxu0
  %v583 = vadd.f32 %v470, %v582
  %584 = vmatmul.f32.gmra.mxu0 %v72
  %v585 = vpop.f32.mrf.mxu0
  %v586 = vadd.f32 %v473, %v585
  %587 = vmatmul.f32.gmra.mxu0 %v74
  %v588 = vpop.f32.mrf.mxu0
  %v589 = vadd.f32 %v476, %v588
  %590 = vdwg.mxu0
  %v591 = vmul.f32 %v270, 0.0625
  %v592 = vmul.f32 %v273, 0.0625
  %v593 = vmul.f32 %v276, 0.0625
  %v594 = vmul.f32 %v279, 0.0625
  %v595 = vmul.f32 %v282, 0.0625
  %v596 = vmul.f32 %v285, 0.0625
  %v597 = vmul.f32 %v288, 0.0625
  %v598 = vmul.f32 %v291, 0.0625
  %v599 = vmul.f32 %v294, 0.0625
  %v600 = vmul.f32 %v297, 0.0625
  %v601 = vmul.f32 %v300, 0.0625
  %v602 = vmul.f32 %v303, 0.0625
  %v603 = vmul.f32 %v306, 0.0625
  %v604 = vmul.f32 %v309, 0.0625
  %v605 = vmul.f32 %v312, 0.0625
  %v606 = vmul.f32 %v315, 0.0625
  %v607 = vmul.f32 %v318, 0.0625
  %v608 = vmul.f32 %v321, 0.0625
  %v609 = vmul.f32 %v324, 0.0625
  %v610 = vmul.f32 %v327, 0.0625
  %v611 = vmul.f32 %v330, 0.0625
  %v612 = vmul.f32 %v333, 0.0625
  %v613 = vmul.f32 %v336, 0.0625
  %v614 = vmul.f32 %v339, 0.0625
  %v615 = vmul.f32 %v342, 0.0625
  %v616 = vmul.f32 %v345, 0.0625
  %v617 = vmul.f32 %v348, 0.0625
  %v618 = vmul.f32 %v351, 0.0625
  %v619 = vmul.f32 %v354, 0.0625
  %v620 = vmul.f32 %v357, 0.0625
  %v621 = vmul.f32 %v360, 0.0625
  %v622 = vmul.f32 %v363, 0.0625
  %639 = vrot.lane.b32.xlu0 %v270, 64
  %v640 = vpop.permute.xlu0 %639
  %641 = vrot.lane.b32.xlu0 %v273, 64
  %v642 = vpop.permute.xlu0 %641
  %643 = vrot.lane.b32.xlu0 %v276, 64
  %v644 = vpop.permute.xlu0 %643
  %645 = vrot.lane.b32.xlu0 %v279, 64
  %v646 = vpop.permute.xlu0 %645
  %647 = vrot.lane.b32.xlu0 %v282, 64
  %v648 = vpop.permute.xlu0 %647
  %649 = vrot.lane.b32.xlu0 %v285, 64
  %v650 = vpop.permute.xlu0 %649
  %651 = vrot.lane.b32.xlu0 %v288, 64
  %v652 = vpop.permute.xlu0 %651
  %653 = vrot.lane.b32.xlu0 %v291, 64
  %v654 = vpop.permute.xlu0 %653
  %655 = vrot.lane.b32.xlu0 %v294, 64
  %v656 = vpop.permute.xlu0 %655
  %657 = vrot.lane.b32.xlu0 %v297, 64
  %v658 = vpop.permute.xlu0 %657
  %659 = vrot.lane.b32.xlu0 %v300, 64
  %v660 = vpop.permute.xlu0 %659
  %661 = vrot.lane.b32.xlu0 %v303, 64
  %v662 = vpop.permute.xlu0 %661
  %663 = vrot.lane.b32.xlu0 %v306, 64
  %v664 = vpop.permute.xlu0 %663
  %665 = vrot.lane.b32.xlu0 %v309, 64
  %v666 = vpop.permute.xlu0 %665
  %667 = vrot.lane.b32.xlu0 %v312, 64
  %v668 = vpop.permute.xlu0 %667
  %669 = vrot.lane.b32.xlu0 %v315, 64
  %v670 = vpop.permute.xlu0 %669
  %vm671 = vcmask 523264
  %v673 = vsel %vm671, %v591, 0
  %v676 = vsel %vm671, %v592, 0
  %v679 = vsel %vm671, %v593, 0
  %v682 = vsel %vm671, %v594, 0
  %v685 = vsel %vm671, %v595, 0
  %v688 = vsel %vm671, %v596, 0
  %v691 = vsel %vm671, %v597, 0
  %v694 = vsel %vm671, %v598, 0
  %v697 = vsel %vm671, %v599, 0
  %v700 = vsel %vm671, %v600, 0
  %v703 = vsel %vm671, %v601, 0
  %v706 = vsel %vm671, %v602, 0
  %v709 = vsel %vm671, %v603, 0
  %v712 = vsel %vm671, %v604, 0
  %v715 = vsel %vm671, %v605, 0
  %v718 = vsel %vm671, %v606, 0
  %v720 = vsel %vm671, %v640, 0
  %v722 = vsel %vm671, %v642, 0
  %v724 = vsel %vm671, %v644, 0
  %v726 = vsel %vm671, %v646, 0
  %v728 = vsel %vm671, %v648, 0
  %v730 = vsel %vm671, %v650, 0
  %v732 = vsel %vm671, %v652, 0
  %v734 = vsel %vm671, %v654, 0
  %v736 = vsel %vm671, %v656, 0
  %v738 = vsel %vm671, %v658, 0
  %v740 = vsel %vm671, %v660, 0
  %v742 = vsel %vm671, %v662, 0
  %v744 = vsel %vm671, %v664, 0
  %v746 = vsel %vm671, %v666, 0
  %v748 = vsel %vm671, %v668, 0
  %v750 = vsel %vm671, %v670, 0
  %752 = vmatpush.xpose.msra.mxu0 %v750
  %753 = vmatpush.xpose.msra.mxu0 %v748
  %754 = vmatpush.xpose.msra.mxu0 %v746
  %755 = vmatpush.xpose.msra.mxu0 %v744
  %756 = vmatpush.xpose.msra.mxu0 %v742
  %757 = vmatpush.xpose.msra.mxu0 %v740
  %758 = vmatpush.xpose.msra.mxu0 %v738
  %759 = vmatpush.xpose.msra.mxu0 %v736
  %760 = vmatpush.xpose.msra.mxu0 %v734
  %761 = vmatpush.xpose.msra.mxu0 %v732
  %762 = vmatpush.xpose.msra.mxu0 %v730
  %763 = vmatpush.xpose.msra.mxu0 %v728
  %764 = vmatpush.xpose.msra.mxu0 %v726
  %765 = vmatpush.xpose.msra.mxu0 %v724
  %766 = vmatpush.xpose.msra.mxu0 %v722
  %767 = vmatpush.xpose.msra.mxu0 %v720
  %768 = vmatmul.f32.gmra.mxu0 %v673
  %v769 = vpop.f32.mrf.mxu0
  %v770 = vadd.f32 0.0, %v769
  %771 = vmatmul.f32.gmra.mxu0 %v676
  %v772 = vpop.f32.mrf.mxu0
  %v773 = vadd.f32 0.0, %v772
  %774 = vmatmul.f32.gmra.mxu0 %v679
  %v775 = vpop.f32.mrf.mxu0
  %v776 = vadd.f32 0.0, %v775
  %777 = vmatmul.f32.gmra.mxu0 %v682
  %v778 = vpop.f32.mrf.mxu0
  %v779 = vadd.f32 0.0, %v778
  %780 = vmatmul.f32.gmra.mxu0 %v685
  %v781 = vpop.f32.mrf.mxu0
  %v782 = vadd.f32 0.0, %v781
  %783 = vmatmul.f32.gmra.mxu0 %v688
  %v784 = vpop.f32.mrf.mxu0
  %v785 = vadd.f32 0.0, %v784
  %786 = vmatmul.f32.gmra.mxu0 %v691
  %v787 = vpop.f32.mrf.mxu0
  %v788 = vadd.f32 0.0, %v787
  %789 = vmatmul.f32.gmra.mxu0 %v694
  %v790 = vpop.f32.mrf.mxu0
  %v791 = vadd.f32 0.0, %v790
  %792 = vmatmul.f32.gmra.mxu0 %v697
  %v793 = vpop.f32.mrf.mxu0
  %v794 = vadd.f32 0.0, %v793
  %795 = vmatmul.f32.gmra.mxu0 %v700
  %v796 = vpop.f32.mrf.mxu0
  %v797 = vadd.f32 0.0, %v796
  %798 = vmatmul.f32.gmra.mxu0 %v703
  %v799 = vpop.f32.mrf.mxu0
  %v800 = vadd.f32 0.0, %v799
  %801 = vmatmul.f32.gmra.mxu0 %v706
  %v802 = vpop.f32.mrf.mxu0
  %v803 = vadd.f32 0.0, %v802
  %804 = vmatmul.f32.gmra.mxu0 %v709
  %v805 = vpop.f32.mrf.mxu0
  %v806 = vadd.f32 0.0, %v805
  %807 = vmatmul.f32.gmra.mxu0 %v712
  %v808 = vpop.f32.mrf.mxu0
  %v809 = vadd.f32 0.0, %v808
  %810 = vmatmul.f32.gmra.mxu0 %v715
  %v811 = vpop.f32.mrf.mxu0
  %v812 = vadd.f32 0.0, %v811
  %813 = vmatmul.f32.gmra.mxu0 %v718
  %v814 = vpop.f32.mrf.mxu0
  %v815 = vadd.f32 0.0, %v814
  %816 = vdwg.mxu0
  %833 = vrot.lane.b32.xlu0 %v318, 64
  %v834 = vpop.permute.xlu0 %833
  %835 = vrot.lane.b32.xlu0 %v321, 64
  %v836 = vpop.permute.xlu0 %835
  %837 = vrot.lane.b32.xlu0 %v324, 64
  %v838 = vpop.permute.xlu0 %837
  %839 = vrot.lane.b32.xlu0 %v327, 64
  %v840 = vpop.permute.xlu0 %839
  %841 = vrot.lane.b32.xlu0 %v330, 64
  %v842 = vpop.permute.xlu0 %841
  %843 = vrot.lane.b32.xlu0 %v333, 64
  %v844 = vpop.permute.xlu0 %843
  %845 = vrot.lane.b32.xlu0 %v336, 64
  %v846 = vpop.permute.xlu0 %845
  %847 = vrot.lane.b32.xlu0 %v339, 64
  %v848 = vpop.permute.xlu0 %847
  %849 = vrot.lane.b32.xlu0 %v342, 64
  %v850 = vpop.permute.xlu0 %849
  %851 = vrot.lane.b32.xlu0 %v345, 64
  %v852 = vpop.permute.xlu0 %851
  %853 = vrot.lane.b32.xlu0 %v348, 64
  %v854 = vpop.permute.xlu0 %853
  %855 = vrot.lane.b32.xlu0 %v351, 64
  %v856 = vpop.permute.xlu0 %855
  %857 = vrot.lane.b32.xlu0 %v354, 64
  %v858 = vpop.permute.xlu0 %857
  %859 = vrot.lane.b32.xlu0 %v357, 64
  %v860 = vpop.permute.xlu0 %859
  %861 = vrot.lane.b32.xlu0 %v360, 64
  %v862 = vpop.permute.xlu0 %861
  %863 = vrot.lane.b32.xlu0 %v363, 64
  %v864 = vpop.permute.xlu0 %863
  %v866 = vsel %vm671, %v607, 0
  %v869 = vsel %vm671, %v608, 0
  %v872 = vsel %vm671, %v609, 0
  %v875 = vsel %vm671, %v610, 0
  %v878 = vsel %vm671, %v611, 0
  %v881 = vsel %vm671, %v612, 0
  %v884 = vsel %vm671, %v613, 0
  %v887 = vsel %vm671, %v614, 0
  %v890 = vsel %vm671, %v615, 0
  %v893 = vsel %vm671, %v616, 0
  %v896 = vsel %vm671, %v617, 0
  %v899 = vsel %vm671, %v618, 0
  %v902 = vsel %vm671, %v619, 0
  %v905 = vsel %vm671, %v620, 0
  %v908 = vsel %vm671, %v621, 0
  %v911 = vsel %vm671, %v622, 0
  %v913 = vsel %vm671, %v834, 0
  %v915 = vsel %vm671, %v836, 0
  %v917 = vsel %vm671, %v838, 0
  %v919 = vsel %vm671, %v840, 0
  %v921 = vsel %vm671, %v842, 0
  %v923 = vsel %vm671, %v844, 0
  %v925 = vsel %vm671, %v846, 0
  %v927 = vsel %vm671, %v848, 0
  %v929 = vsel %vm671, %v850, 0
  %v931 = vsel %vm671, %v852, 0
  %v933 = vsel %vm671, %v854, 0
  %v935 = vsel %vm671, %v856, 0
  %v937 = vsel %vm671, %v858, 0
  %v939 = vsel %vm671, %v860, 0
  %v941 = vsel %vm671, %v862, 0
  %v943 = vsel %vm671, %v864, 0
  %945 = vmatpush.xpose.msra.mxu0 %v943
  %946 = vmatpush.xpose.msra.mxu0 %v941
  %947 = vmatpush.xpose.msra.mxu0 %v939
  %948 = vmatpush.xpose.msra.mxu0 %v937
  %949 = vmatpush.xpose.msra.mxu0 %v935
  %950 = vmatpush.xpose.msra.mxu0 %v933
  %951 = vmatpush.xpose.msra.mxu0 %v931
  %952 = vmatpush.xpose.msra.mxu0 %v929
  %953 = vmatpush.xpose.msra.mxu0 %v927
  %954 = vmatpush.xpose.msra.mxu0 %v925
  %955 = vmatpush.xpose.msra.mxu0 %v923
  %956 = vmatpush.xpose.msra.mxu0 %v921
  %957 = vmatpush.xpose.msra.mxu0 %v919
  %958 = vmatpush.xpose.msra.mxu0 %v917
  %959 = vmatpush.xpose.msra.mxu0 %v915
  %960 = vmatpush.xpose.msra.mxu0 %v913
  %961 = vmatmul.f32.gmra.mxu0 %v866
  %v962 = vpop.f32.mrf.mxu0
  %v963 = vadd.f32 0.0, %v962
  %964 = vmatmul.f32.gmra.mxu0 %v869
  %v965 = vpop.f32.mrf.mxu0
  %v966 = vadd.f32 0.0, %v965
  %967 = vmatmul.f32.gmra.mxu0 %v872
  %v968 = vpop.f32.mrf.mxu0
  %v969 = vadd.f32 0.0, %v968
  %970 = vmatmul.f32.gmra.mxu0 %v875
  %v971 = vpop.f32.mrf.mxu0
  %v972 = vadd.f32 0.0, %v971
  %973 = vmatmul.f32.gmra.mxu0 %v878
  %v974 = vpop.f32.mrf.mxu0
  %v975 = vadd.f32 0.0, %v974
  %976 = vmatmul.f32.gmra.mxu0 %v881
  %v977 = vpop.f32.mrf.mxu0
  %v978 = vadd.f32 0.0, %v977
  %979 = vmatmul.f32.gmra.mxu0 %v884
  %v980 = vpop.f32.mrf.mxu0
  %v981 = vadd.f32 0.0, %v980
  %982 = vmatmul.f32.gmra.mxu0 %v887
  %v983 = vpop.f32.mrf.mxu0
  %v984 = vadd.f32 0.0, %v983
  %985 = vmatmul.f32.gmra.mxu0 %v890
  %v986 = vpop.f32.mrf.mxu0
  %v987 = vadd.f32 0.0, %v986
  %988 = vmatmul.f32.gmra.mxu0 %v893
  %v989 = vpop.f32.mrf.mxu0
  %v990 = vadd.f32 0.0, %v989
  %991 = vmatmul.f32.gmra.mxu0 %v896
  %v992 = vpop.f32.mrf.mxu0
  %v993 = vadd.f32 0.0, %v992
  %994 = vmatmul.f32.gmra.mxu0 %v899
  %v995 = vpop.f32.mrf.mxu0
  %v996 = vadd.f32 0.0, %v995
  %997 = vmatmul.f32.gmra.mxu0 %v902
  %v998 = vpop.f32.mrf.mxu0
  %v999 = vadd.f32 0.0, %v998
  %1000 = vmatmul.f32.gmra.mxu0 %v905
  %v1001 = vpop.f32.mrf.mxu0
  %v1002 = vadd.f32 0.0, %v1001
  %1003 = vmatmul.f32.gmra.mxu0 %v908
  %v1004 = vpop.f32.mrf.mxu0
  %v1005 = vadd.f32 0.0, %v1004
  %1006 = vmatmul.f32.gmra.mxu0 %v911
  %v1007 = vpop.f32.mrf.mxu0
  %v1008 = vadd.f32 0.0, %v1007
  %1009 = vdwg.mxu0
  %1010 = vmax.xlane.f32.xlu0 %v770
  %v1011 = vpop.xlane.xlu0 %1010
  %1012 = vmax.xlane.f32.xlu0 %v773
  %v1013 = vpop.xlane.xlu0 %1012
  %1014 = vmax.xlane.f32.xlu0 %v776
  %v1015 = vpop.xlane.xlu0 %1014
  %1016 = vmax.xlane.f32.xlu0 %v779
  %v1017 = vpop.xlane.xlu0 %1016
  %1018 = vmax.xlane.f32.xlu0 %v782
  %v1019 = vpop.xlane.xlu0 %1018
  %1020 = vmax.xlane.f32.xlu0 %v785
  %v1021 = vpop.xlane.xlu0 %1020
  %1022 = vmax.xlane.f32.xlu0 %v788
  %v1023 = vpop.xlane.xlu0 %1022
  %1024 = vmax.xlane.f32.xlu0 %v791
  %v1025 = vpop.xlane.xlu0 %1024
  %1026 = vmax.xlane.f32.xlu0 %v794
  %v1027 = vpop.xlane.xlu0 %1026
  %1028 = vmax.xlane.f32.xlu0 %v797
  %v1029 = vpop.xlane.xlu0 %1028
  %1030 = vmax.xlane.f32.xlu0 %v800
  %v1031 = vpop.xlane.xlu0 %1030
  %1032 = vmax.xlane.f32.xlu0 %v803
  %v1033 = vpop.xlane.xlu0 %1032
  %1034 = vmax.xlane.f32.xlu0 %v806
  %v1035 = vpop.xlane.xlu0 %1034
  %1036 = vmax.xlane.f32.xlu0 %v809
  %v1037 = vpop.xlane.xlu0 %1036
  %1038 = vmax.xlane.f32.xlu0 %v812
  %v1039 = vpop.xlane.xlu0 %1038
  %1040 = vmax.xlane.f32.xlu0 %v815
  %v1041 = vpop.xlane.xlu0 %1040
  %1042 = vmax.xlane.f32.xlu0 %v963
  %v1043 = vpop.xlane.xlu0 %1042
  %1044 = vmax.xlane.f32.xlu0 %v966
  %v1045 = vpop.xlane.xlu0 %1044
  %1046 = vmax.xlane.f32.xlu0 %v969
  %v1047 = vpop.xlane.xlu0 %1046
  %1048 = vmax.xlane.f32.xlu0 %v972
  %v1049 = vpop.xlane.xlu0 %1048
  %1050 = vmax.xlane.f32.xlu0 %v975
  %v1051 = vpop.xlane.xlu0 %1050
  %1052 = vmax.xlane.f32.xlu0 %v978
  %v1053 = vpop.xlane.xlu0 %1052
  %1054 = vmax.xlane.f32.xlu0 %v981
  %v1055 = vpop.xlane.xlu0 %1054
  %1056 = vmax.xlane.f32.xlu0 %v984
  %v1057 = vpop.xlane.xlu0 %1056
  %1058 = vmax.xlane.f32.xlu0 %v987
  %v1059 = vpop.xlane.xlu0 %1058
  %1060 = vmax.xlane.f32.xlu0 %v990
  %v1061 = vpop.xlane.xlu0 %1060
  %1062 = vmax.xlane.f32.xlu0 %v993
  %v1063 = vpop.xlane.xlu0 %1062
  %1064 = vmax.xlane.f32.xlu0 %v996
  %v1065 = vpop.xlane.xlu0 %1064
  %1066 = vmax.xlane.f32.xlu0 %v999
  %v1067 = vpop.xlane.xlu0 %1066
  %1068 = vmax.xlane.f32.xlu0 %v1002
  %v1069 = vpop.xlane.xlu0 %1068
  %1070 = vmax.xlane.f32.xlu0 %v1005
  %v1071 = vpop.xlane.xlu0 %1070
  %1072 = vmax.xlane.f32.xlu0 %v1008
  %v1073 = vpop.xlane.xlu0 %1072
  %v1074 = vsub.f32 %v770, %v1011
  %v1075 = vsub.f32 %v773, %v1013
  %v1076 = vsub.f32 %v776, %v1015
  %v1077 = vsub.f32 %v779, %v1017
  %v1078 = vsub.f32 %v782, %v1019
  %v1079 = vsub.f32 %v785, %v1021
  %v1080 = vsub.f32 %v788, %v1023
  %v1081 = vsub.f32 %v791, %v1025
  %v1082 = vsub.f32 %v794, %v1027
  %v1083 = vsub.f32 %v797, %v1029
  %v1084 = vsub.f32 %v800, %v1031
  %v1085 = vsub.f32 %v803, %v1033
  %v1086 = vsub.f32 %v806, %v1035
  %v1087 = vsub.f32 %v809, %v1037
  %v1088 = vsub.f32 %v812, %v1039
  %v1089 = vsub.f32 %v815, %v1041
  %v1090 = vsub.f32 %v963, %v1043
  %v1091 = vsub.f32 %v966, %v1045
  %v1092 = vsub.f32 %v969, %v1047
  %v1093 = vsub.f32 %v972, %v1049
  %v1094 = vsub.f32 %v975, %v1051
  %v1095 = vsub.f32 %v978, %v1053
  %v1096 = vsub.f32 %v981, %v1055
  %v1097 = vsub.f32 %v984, %v1057
  %v1098 = vsub.f32 %v987, %v1059
  %v1099 = vsub.f32 %v990, %v1061
  %v1100 = vsub.f32 %v993, %v1063
  %v1101 = vsub.f32 %v996, %v1065
  %v1102 = vsub.f32 %v999, %v1067
  %v1103 = vsub.f32 %v1002, %v1069
  %v1104 = vsub.f32 %v1005, %v1071
  %v1105 = vsub.f32 %v1008, %v1073
  %v1106 = vmul.f32 %v1074, 1.442695
  %v1107 = vpow.pop %v1106
  %v1108 = vmul.f32 %v1075, 1.442695
  %v1109 = vpow.pop %v1108
  %v1110 = vmul.f32 %v1076, 1.442695
  %v1111 = vpow.pop %v1110
  %v1112 = vmul.f32 %v1077, 1.442695
  %v1113 = vpow.pop %v1112
  %v1114 = vmul.f32 %v1078, 1.442695
  %v1115 = vpow.pop %v1114
  %v1116 = vmul.f32 %v1079, 1.442695
  %v1117 = vpow.pop %v1116
  %v1118 = vmul.f32 %v1080, 1.442695
  %v1119 = vpow.pop %v1118
  %v1120 = vmul.f32 %v1081, 1.442695
  %v1121 = vpow.pop %v1120
  %v1122 = vmul.f32 %v1082, 1.442695
  %v1123 = vpow.pop %v1122
  %v1124 = vmul.f32 %v1083, 1.442695
  %v1125 = vpow.pop %v1124
  %v1126 = vmul.f32 %v1084, 1.442695
  %v1127 = vpow.pop %v1126
  %v1128 = vmul.f32 %v1085, 1.442695
  %v1129 = vpow.pop %v1128
  %v1130 = vmul.f32 %v1086, 1.442695
  %v1131 = vpow.pop %v1130
  %v1132 = vmul.f32 %v1087, 1.442695
  %v1133 = vpow.pop %v1132
  %v1134 = vmul.f32 %v1088, 1.442695
  %v1135 = vpow.pop %v1134
  %v1136 = vmul.f32 %v1089, 1.442695
  %v1137 = vpow.pop %v1136
  %v1138 = vmul.f32 %v1090, 1.442695
  %v1139 = vpow.pop %v1138
  %v1140 = vmul.f32 %v1091, 1.442695
  %v1141 = vpow.pop %v1140
  %v1142 = vmul.f32 %v1092, 1.442695
  %v1143 = vpow.pop %v1142
  %v1144 = vmul.f32 %v1093, 1.442695
  %v1145 = vpow.pop %v1144
  %v1146 = vmul.f32 %v1094, 1.442695
  %v1147 = vpow.pop %v1146
  %v1148 = vmul.f32 %v1095, 1.442695
  %v1149 = vpow.pop %v1148
  %v1150 = vmul.f32 %v1096, 1.442695
  %v1151 = vpow.pop %v1150
  %v1152 = vmul.f32 %v1097, 1.442695
  %v1153 = vpow.pop %v1152
  %v1154 = vmul.f32 %v1098, 1.442695
  %v1155 = vpow.pop %v1154
  %v1156 = vmul.f32 %v1099, 1.442695
  %v1157 = vpow.pop %v1156
  %v1158 = vmul.f32 %v1100, 1.442695
  %v1159 = vpow.pop %v1158
  %v1160 = vmul.f32 %v1101, 1.442695
  %v1161 = vpow.pop %v1160
  %v1162 = vmul.f32 %v1102, 1.442695
  %v1163 = vpow.pop %v1162
  %v1164 = vmul.f32 %v1103, 1.442695
  %v1165 = vpow.pop %v1164
  %v1166 = vmul.f32 %v1104, 1.442695
  %v1167 = vpow.pop %v1166
  %v1168 = vmul.f32 %v1105, 1.442695
  %v1169 = vpow.pop %v1168
  %1170 = vadd.xlane.f32.xlu0 %v1107
  %v1171 = vpop.xlane.xlu0 %1170
  %1172 = vadd.xlane.f32.xlu0 %v1109
  %v1173 = vpop.xlane.xlu0 %1172
  %1174 = vadd.xlane.f32.xlu0 %v1111
  %v1175 = vpop.xlane.xlu0 %1174
  %1176 = vadd.xlane.f32.xlu0 %v1113
  %v1177 = vpop.xlane.xlu0 %1176
  %1178 = vadd.xlane.f32.xlu0 %v1115
  %v1179 = vpop.xlane.xlu0 %1178
  %1180 = vadd.xlane.f32.xlu0 %v1117
  %v1181 = vpop.xlane.xlu0 %1180
  %1182 = vadd.xlane.f32.xlu0 %v1119
  %v1183 = vpop.xlane.xlu0 %1182
  %1184 = vadd.xlane.f32.xlu0 %v1121
  %v1185 = vpop.xlane.xlu0 %1184
  %1186 = vadd.xlane.f32.xlu0 %v1123
  %v1187 = vpop.xlane.xlu0 %1186
  %1188 = vadd.xlane.f32.xlu0 %v1125
  %v1189 = vpop.xlane.xlu0 %1188
  %1190 = vadd.xlane.f32.xlu0 %v1127
  %v1191 = vpop.xlane.xlu0 %1190
  %1192 = vadd.xlane.f32.xlu0 %v1129
  %v1193 = vpop.xlane.xlu0 %1192
  %1194 = vadd.xlane.f32.xlu0 %v1131
  %v1195 = vpop.xlane.xlu0 %1194
  %1196 = vadd.xlane.f32.xlu0 %v1133
  %v1197 = vpop.xlane.xlu0 %1196
  %1198 = vadd.xlane.f32.xlu0 %v1135
  %v1199 = vpop.xlane.xlu0 %1198
  %1200 = vadd.xlane.f32.xlu0 %v1137
  %v1201 = vpop.xlane.xlu0 %1200
  %1202 = vadd.xlane.f32.xlu0 %v1139
  %v1203 = vpop.xlane.xlu0 %1202
  %1204 = vadd.xlane.f32.xlu0 %v1141
  %v1205 = vpop.xlane.xlu0 %1204
  %1206 = vadd.xlane.f32.xlu0 %v1143
  %v1207 = vpop.xlane.xlu0 %1206
  %1208 = vadd.xlane.f32.xlu0 %v1145
  %v1209 = vpop.xlane.xlu0 %1208
  %1210 = vadd.xlane.f32.xlu0 %v1147
  %v1211 = vpop.xlane.xlu0 %1210
  %1212 = vadd.xlane.f32.xlu0 %v1149
  %v1213 = vpop.xlane.xlu0 %1212
  %1214 = vadd.xlane.f32.xlu0 %v1151
  %v1215 = vpop.xlane.xlu0 %1214
  %1216 = vadd.xlane.f32.xlu0 %v1153
  %v1217 = vpop.xlane.xlu0 %1216
  %1218 = vadd.xlane.f32.xlu0 %v1155
  %v1219 = vpop.xlane.xlu0 %1218
  %1220 = vadd.xlane.f32.xlu0 %v1157
  %v1221 = vpop.xlane.xlu0 %1220
  %1222 = vadd.xlane.f32.xlu0 %v1159
  %v1223 = vpop.xlane.xlu0 %1222
  %1224 = vadd.xlane.f32.xlu0 %v1161
  %v1225 = vpop.xlane.xlu0 %1224
  %1226 = vadd.xlane.f32.xlu0 %v1163
  %v1227 = vpop.xlane.xlu0 %1226
  %1228 = vadd.xlane.f32.xlu0 %v1165
  %v1229 = vpop.xlane.xlu0 %1228
  %1230 = vadd.xlane.f32.xlu0 %v1167
  %v1231 = vpop.xlane.xlu0 %1230
  %1232 = vadd.xlane.f32.xlu0 %v1169
  %v1233 = vpop.xlane.xlu0 %1232
  %1234 = vmatpush.msra.mxu0 %v541
  %1235 = vmatpush.msra.mxu0 %v538
  %1236 = vmatpush.msra.mxu0 %v535
  %1237 = vmatpush.msra.mxu0 %v532
  %1238 = vmatpush.msra.mxu0 %v529
  %1239 = vmatpush.msra.mxu0 %v526
  %1240 = vmatpush.msra.mxu0 %v523
  %1241 = vmatpush.msra.mxu0 %v520
  %1242 = vmatpush.msra.mxu0 %v517
  %1243 = vmatpush.msra.mxu0 %v514
  %1244 = vmatpush.msra.mxu0 %v511
  %1245 = vmatpush.msra.mxu0 %v508
  %1246 = vmatpush.msra.mxu0 %v505
  %1247 = vmatpush.msra.mxu0 %v502
  %1248 = vmatpush.msra.mxu0 %v499
  %1249 = vmatpush.msra.mxu0 %v496
  %1250 = vmatmul.f32.gmra.mxu0 %v1107
  %v1251 = vpop.f32.mrf.mxu0
  %v1252 = vadd.f32 0.0, %v1251
  %1253 = vmatmul.f32.gmra.mxu0 %v1109
  %v1254 = vpop.f32.mrf.mxu0
  %v1255 = vadd.f32 0.0, %v1254
  %1256 = vmatmul.f32.gmra.mxu0 %v1111
  %v1257 = vpop.f32.mrf.mxu0
  %v1258 = vadd.f32 0.0, %v1257
  %1259 = vmatmul.f32.gmra.mxu0 %v1113
  %v1260 = vpop.f32.mrf.mxu0
  %v1261 = vadd.f32 0.0, %v1260
  %1262 = vmatmul.f32.gmra.mxu0 %v1115
  %v1263 = vpop.f32.mrf.mxu0
  %v1264 = vadd.f32 0.0, %v1263
  %1265 = vmatmul.f32.gmra.mxu0 %v1117
  %v1266 = vpop.f32.mrf.mxu0
  %v1267 = vadd.f32 0.0, %v1266
  %1268 = vmatmul.f32.gmra.mxu0 %v1119
  %v1269 = vpop.f32.mrf.mxu0
  %v1270 = vadd.f32 0.0, %v1269
  %1271 = vmatmul.f32.gmra.mxu0 %v1121
  %v1272 = vpop.f32.mrf.mxu0
  %v1273 = vadd.f32 0.0, %v1272
  %1274 = vmatmul.f32.gmra.mxu0 %v1123
  %v1275 = vpop.f32.mrf.mxu0
  %v1276 = vadd.f32 0.0, %v1275
  %1277 = vmatmul.f32.gmra.mxu0 %v1125
  %v1278 = vpop.f32.mrf.mxu0
  %v1279 = vadd.f32 0.0, %v1278
  %1280 = vmatmul.f32.gmra.mxu0 %v1127
  %v1281 = vpop.f32.mrf.mxu0
  %v1282 = vadd.f32 0.0, %v1281
  %1283 = vmatmul.f32.gmra.mxu0 %v1129
  %v1284 = vpop.f32.mrf.mxu0
  %v1285 = vadd.f32 0.0, %v1284
  %1286 = vmatmul.f32.gmra.mxu0 %v1131
  %v1287 = vpop.f32.mrf.mxu0
  %v1288 = vadd.f32 0.0, %v1287
  %1289 = vmatmul.f32.gmra.mxu0 %v1133
  %v1290 = vpop.f32.mrf.mxu0
  %v1291 = vadd.f32 0.0, %v1290
  %1292 = vmatmul.f32.gmra.mxu0 %v1135
  %v1293 = vpop.f32.mrf.mxu0
  %v1294 = vadd.f32 0.0, %v1293
  %1295 = vmatmul.f32.gmra.mxu0 %v1137
  %v1296 = vpop.f32.mrf.mxu0
  %v1297 = vadd.f32 0.0, %v1296
  %1298 = vdwg.mxu0
  %1299 = vmatpush.msra.mxu0 %v589
  %1300 = vmatpush.msra.mxu0 %v586
  %1301 = vmatpush.msra.mxu0 %v583
  %1302 = vmatpush.msra.mxu0 %v580
  %1303 = vmatpush.msra.mxu0 %v577
  %1304 = vmatpush.msra.mxu0 %v574
  %1305 = vmatpush.msra.mxu0 %v571
  %1306 = vmatpush.msra.mxu0 %v568
  %1307 = vmatpush.msra.mxu0 %v565
  %1308 = vmatpush.msra.mxu0 %v562
  %1309 = vmatpush.msra.mxu0 %v559
  %1310 = vmatpush.msra.mxu0 %v556
  %1311 = vmatpush.msra.mxu0 %v553
  %1312 = vmatpush.msra.mxu0 %v550
  %1313 = vmatpush.msra.mxu0 %v547
  %1314 = vmatpush.msra.mxu0 %v544
  %1315 = vmatmul.f32.gmra.mxu0 %v1139
  %v1316 = vpop.f32.mrf.mxu0
  %v1317 = vadd.f32 0.0, %v1316
  %1318 = vmatmul.f32.gmra.mxu0 %v1141
  %v1319 = vpop.f32.mrf.mxu0
  %v1320 = vadd.f32 0.0, %v1319
  %1321 = vmatmul.f32.gmra.mxu0 %v1143
  %v1322 = vpop.f32.mrf.mxu0
  %v1323 = vadd.f32 0.0, %v1322
  %1324 = vmatmul.f32.gmra.mxu0 %v1145
  %v1325 = vpop.f32.mrf.mxu0
  %v1326 = vadd.f32 0.0, %v1325
  %1327 = vmatmul.f32.gmra.mxu0 %v1147
  %v1328 = vpop.f32.mrf.mxu0
  %v1329 = vadd.f32 0.0, %v1328
  %1330 = vmatmul.f32.gmra.mxu0 %v1149
  %v1331 = vpop.f32.mrf.mxu0
  %v1332 = vadd.f32 0.0, %v1331
  %1333 = vmatmul.f32.gmra.mxu0 %v1151
  %v1334 = vpop.f32.mrf.mxu0
  %v1335 = vadd.f32 0.0, %v1334
  %1336 = vmatmul.f32.gmra.mxu0 %v1153
  %v1337 = vpop.f32.mrf.mxu0
  %v1338 = vadd.f32 0.0, %v1337
  %1339 = vmatmul.f32.gmra.mxu0 %v1155
  %v1340 = vpop.f32.mrf.mxu0
  %v1341 = vadd.f32 0.0, %v1340
  %1342 = vmatmul.f32.gmra.mxu0 %v1157
  %v1343 = vpop.f32.mrf.mxu0
  %v1344 = vadd.f32 0.0, %v1343
  %1345 = vmatmul.f32.gmra.mxu0 %v1159
  %v1346 = vpop.f32.mrf.mxu0
  %v1347 = vadd.f32 0.0, %v1346
  %1348 = vmatmul.f32.gmra.mxu0 %v1161
  %v1349 = vpop.f32.mrf.mxu0
  %v1350 = vadd.f32 0.0, %v1349
  %1351 = vmatmul.f32.gmra.mxu0 %v1163
  %v1352 = vpop.f32.mrf.mxu0
  %v1353 = vadd.f32 0.0, %v1352
  %1354 = vmatmul.f32.gmra.mxu0 %v1165
  %v1355 = vpop.f32.mrf.mxu0
  %v1356 = vadd.f32 0.0, %v1355
  %1357 = vmatmul.f32.gmra.mxu0 %v1167
  %v1358 = vpop.f32.mrf.mxu0
  %v1359 = vadd.f32 0.0, %v1358
  %1360 = vmatmul.f32.gmra.mxu0 %v1169
  %v1361 = vpop.f32.mrf.mxu0
  %v1362 = vadd.f32 0.0, %v1361
  %1363 = vdwg.mxu0
  %v1364 = vrcp.pop %v1171
  %v1365 = vmul.f32 %v1171, %v1364
  %v1366 = vsub.f32 1.0, %v1365
  %v1367 = vmul.f32 %v1364, %v1366
  %v1368 = vadd.f32 %v1364, %v1367
  %vm1369 = vweird.f32 %v1171
  %vm1370 = vweird.f32 %v1364
  %vm1371 = vmor %vm1369, %vm1370
  %v1372 = vsel %vm1371, %v1364, %v1368
  %v1373 = vand.u32 2147483647, %v1171
  %vm1374 = vcmp.eq.f32.partialorder %v1373, 8.507059e+37
  %v1375 = vand.u32 %v1171, 2147483648
  %v1376 = vor.u32 1.1754944e-38, %v1375
  %v1377 = vsel %vm1374, %v1376, %v1372
  %v1378 = vmul.f32 1.0, %v1377
  %v1379 = vrcp.pop %v1173
  %v1380 = vmul.f32 %v1173, %v1379
  %v1381 = vsub.f32 1.0, %v1380
  %v1382 = vmul.f32 %v1379, %v1381
  %v1383 = vadd.f32 %v1379, %v1382
  %vm1384 = vweird.f32 %v1173
  %vm1385 = vweird.f32 %v1379
  %vm1386 = vmor %vm1384, %vm1385
  %v1387 = vsel %vm1386, %v1379, %v1383
  %v1388 = vand.u32 2147483647, %v1173
  %vm1389 = vcmp.eq.f32.partialorder %v1388, 8.507059e+37
  %v1390 = vand.u32 %v1173, 2147483648
  %v1391 = vor.u32 1.1754944e-38, %v1390
  %v1392 = vsel %vm1389, %v1391, %v1387
  %v1393 = vmul.f32 1.0, %v1392
  %v1394 = vrcp.pop %v1175
  %v1395 = vmul.f32 %v1175, %v1394
  %v1396 = vsub.f32 1.0, %v1395
  %v1397 = vmul.f32 %v1394, %v1396
  %v1398 = vadd.f32 %v1394, %v1397
  %vm1399 = vweird.f32 %v1175
  %vm1400 = vweird.f32 %v1394
  %vm1401 = vmor %vm1399, %vm1400
  %v1402 = vsel %vm1401, %v1394, %v1398
  %v1403 = vand.u32 2147483647, %v1175
  %vm1404 = vcmp.eq.f32.partialorder %v1403, 8.507059e+37
  %v1405 = vand.u32 %v1175, 2147483648
  %v1406 = vor.u32 1.1754944e-38, %v1405
  %v1407 = vsel %vm1404, %v1406, %v1402
  %v1408 = vmul.f32 1.0, %v1407
  %v1409 = vrcp.pop %v1177
  %v1410 = vmul.f32 %v1177, %v1409
  %v1411 = vsub.f32 1.0, %v1410
  %v1412 = vmul.f32 %v1409, %v1411
  %v1413 = vadd.f32 %v1409, %v1412
  %vm1414 = vweird.f32 %v1177
  %vm1415 = vweird.f32 %v1409
  %vm1416 = vmor %vm1414, %vm1415
  %v1417 = vsel %vm1416, %v1409, %v1413
  %v1418 = vand.u32 2147483647, %v1177
  %vm1419 = vcmp.eq.f32.partialorder %v1418, 8.507059e+37
  %v1420 = vand.u32 %v1177, 2147483648
  %v1421 = vor.u32 1.1754944e-38, %v1420
  %v1422 = vsel %vm1419, %v1421, %v1417
  %v1423 = vmul.f32 1.0, %v1422
  %v1424 = vrcp.pop %v1179
  %v1425 = vmul.f32 %v1179, %v1424
  %v1426 = vsub.f32 1.0, %v1425
  %v1427 = vmul.f32 %v1424, %v1426
  %v1428 = vadd.f32 %v1424, %v1427
  %vm1429 = vweird.f32 %v1179
  %vm1430 = vweird.f32 %v1424
  %vm1431 = vmor %vm1429, %vm1430
  %v1432 = vsel %vm1431, %v1424, %v1428
  %v1433 = vand.u32 2147483647, %v1179
  %vm1434 = vcmp.eq.f32.partialorder %v1433, 8.507059e+37
  %v1435 = vand.u32 %v1179, 2147483648
  %v1436 = vor.u32 1.1754944e-38, %v1435
  %v1437 = vsel %vm1434, %v1436, %v1432
  %v1438 = vmul.f32 1.0, %v1437
  %v1439 = vrcp.pop %v1181
  %v1440 = vmul.f32 %v1181, %v1439
  %v1441 = vsub.f32 1.0, %v1440
  %v1442 = vmul.f32 %v1439, %v1441
  %v1443 = vadd.f32 %v1439, %v1442
  %vm1444 = vweird.f32 %v1181
  %vm1445 = vweird.f32 %v1439
  %vm1446 = vmor %vm1444, %vm1445
  %v1447 = vsel %vm1446, %v1439, %v1443
  %v1448 = vand.u32 2147483647, %v1181
  %vm1449 = vcmp.eq.f32.partialorder %v1448, 8.507059e+37
  %v1450 = vand.u32 %v1181, 2147483648
  %v1451 = vor.u32 1.1754944e-38, %v1450
  %v1452 = vsel %vm1449, %v1451, %v1447
  %v1453 = vmul.f32 1.0, %v1452
  %v1454 = vrcp.pop %v1183
  %v1455 = vmul.f32 %v1183, %v1454
  %v1456 = vsub.f32 1.0, %v1455
  %v1457 = vmul.f32 %v1454, %v1456
  %v1458 = vadd.f32 %v1454, %v1457
  %vm1459 = vweird.f32 %v1183
  %vm1460 = vweird.f32 %v1454
  %vm1461 = vmor %vm1459, %vm1460
  %v1462 = vsel %vm1461, %v1454, %v1458
  %v1463 = vand.u32 2147483647, %v1183
  %vm1464 = vcmp.eq.f32.partialorder %v1463, 8.507059e+37
  %v1465 = vand.u32 %v1183, 2147483648
  %v1466 = vor.u32 1.1754944e-38, %v1465
  %v1467 = vsel %vm1464, %v1466, %v1462
  %v1468 = vmul.f32 1.0, %v1467
  %v1469 = vrcp.pop %v1185
  %v1470 = vmul.f32 %v1185, %v1469
  %v1471 = vsub.f32 1.0, %v1470
  %v1472 = vmul.f32 %v1469, %v1471
  %v1473 = vadd.f32 %v1469, %v1472
  %vm1474 = vweird.f32 %v1185
  %vm1475 = vweird.f32 %v1469
  %vm1476 = vmor %vm1474, %vm1475
  %v1477 = vsel %vm1476, %v1469, %v1473
  %v1478 = vand.u32 2147483647, %v1185
  %vm1479 = vcmp.eq.f32.partialorder %v1478, 8.507059e+37
  %v1480 = vand.u32 %v1185, 2147483648
  %v1481 = vor.u32 1.1754944e-38, %v1480
  %v1482 = vsel %vm1479, %v1481, %v1477
  %v1483 = vmul.f32 1.0, %v1482
  %v1484 = vrcp.pop %v1187
  %v1485 = vmul.f32 %v1187, %v1484
  %v1486 = vsub.f32 1.0, %v1485
  %v1487 = vmul.f32 %v1484, %v1486
  %v1488 = vadd.f32 %v1484, %v1487
  %vm1489 = vweird.f32 %v1187
  %vm1490 = vweird.f32 %v1484
  %vm1491 = vmor %vm1489, %vm1490
  %v1492 = vsel %vm1491, %v1484, %v1488
  %v1493 = vand.u32 2147483647, %v1187
  %vm1494 = vcmp.eq.f32.partialorder %v1493, 8.507059e+37
  %v1495 = vand.u32 %v1187, 2147483648
  %v1496 = vor.u32 1.1754944e-38, %v1495
  %v1497 = vsel %vm1494, %v1496, %v1492
  %v1498 = vmul.f32 1.0, %v1497
  %v1499 = vrcp.pop %v1189
  %v1500 = vmul.f32 %v1189, %v1499
  %v1501 = vsub.f32 1.0, %v1500
  %v1502 = vmul.f32 %v1499, %v1501
  %v1503 = vadd.f32 %v1499, %v1502
  %vm1504 = vweird.f32 %v1189
  %vm1505 = vweird.f32 %v1499
  %vm1506 = vmor %vm1504, %vm1505
  %v1507 = vsel %vm1506, %v1499, %v1503
  %v1508 = vand.u32 2147483647, %v1189
  %vm1509 = vcmp.eq.f32.partialorder %v1508, 8.507059e+37
  %v1510 = vand.u32 %v1189, 2147483648
  %v1511 = vor.u32 1.1754944e-38, %v1510
  %v1512 = vsel %vm1509, %v1511, %v1507
  %v1513 = vmul.f32 1.0, %v1512
  %v1514 = vrcp.pop %v1191
  %v1515 = vmul.f32 %v1191, %v1514
  %v1516 = vsub.f32 1.0, %v1515
  %v1517 = vmul.f32 %v1514, %v1516
  %v1518 = vadd.f32 %v1514, %v1517
  %vm1519 = vweird.f32 %v1191
  %vm1520 = vweird.f32 %v1514
  %vm1521 = vmor %vm1519, %vm1520
  %v1522 = vsel %vm1521, %v1514, %v1518
  %v1523 = vand.u32 2147483647, %v1191
  %vm1524 = vcmp.eq.f32.partialorder %v1523, 8.507059e+37
  %v1525 = vand.u32 %v1191, 2147483648
  %v1526 = vor.u32 1.1754944e-38, %v1525
  %v1527 = vsel %vm1524, %v1526, %v1522
  %v1528 = vmul.f32 1.0, %v1527
  %v1529 = vrcp.pop %v1193
  %v1530 = vmul.f32 %v1193, %v1529
  %v1531 = vsub.f32 1.0, %v1530
  %v1532 = vmul.f32 %v1529, %v1531
  %v1533 = vadd.f32 %v1529, %v1532
  %vm1534 = vweird.f32 %v1193
  %vm1535 = vweird.f32 %v1529
  %vm1536 = vmor %vm1534, %vm1535
  %v1537 = vsel %vm1536, %v1529, %v1533
  %v1538 = vand.u32 2147483647, %v1193
  %vm1539 = vcmp.eq.f32.partialorder %v1538, 8.507059e+37
  %v1540 = vand.u32 %v1193, 2147483648
  %v1541 = vor.u32 1.1754944e-38, %v1540
  %v1542 = vsel %vm1539, %v1541, %v1537
  %v1543 = vmul.f32 1.0, %v1542
  %v1544 = vrcp.pop %v1195
  %v1545 = vmul.f32 %v1195, %v1544
  %v1546 = vsub.f32 1.0, %v1545
  %v1547 = vmul.f32 %v1544, %v1546
  %v1548 = vadd.f32 %v1544, %v1547
  %vm1549 = vweird.f32 %v1195
  %vm1550 = vweird.f32 %v1544
  %vm1551 = vmor %vm1549, %vm1550
  %v1552 = vsel %vm1551, %v1544, %v1548
  %v1553 = vand.u32 2147483647, %v1195
  %vm1554 = vcmp.eq.f32.partialorder %v1553, 8.507059e+37
  %v1555 = vand.u32 %v1195, 2147483648
  %v1556 = vor.u32 1.1754944e-38, %v1555
  %v1557 = vsel %vm1554, %v1556, %v1552
  %v1558 = vmul.f32 1.0, %v1557
  %v1559 = vrcp.pop %v1197
  %v1560 = vmul.f32 %v1197, %v1559
  %v1561 = vsub.f32 1.0, %v1560
  %v1562 = vmul.f32 %v1559, %v1561
  %v1563 = vadd.f32 %v1559, %v1562
  %vm1564 = vweird.f32 %v1197
  %vm1565 = vweird.f32 %v1559
  %vm1566 = vmor %vm1564, %vm1565
  %v1567 = vsel %vm1566, %v1559, %v1563
  %v1568 = vand.u32 2147483647, %v1197
  %vm1569 = vcmp.eq.f32.partialorder %v1568, 8.507059e+37
  %v1570 = vand.u32 %v1197, 2147483648
  %v1571 = vor.u32 1.1754944e-38, %v1570
  %v1572 = vsel %vm1569, %v1571, %v1567
  %v1573 = vmul.f32 1.0, %v1572
  %v1574 = vrcp.pop %v1199
  %v1575 = vmul.f32 %v1199, %v1574
  %v1576 = vsub.f32 1.0, %v1575
  %v1577 = vmul.f32 %v1574, %v1576
  %v1578 = vadd.f32 %v1574, %v1577
  %vm1579 = vweird.f32 %v1199
  %vm1580 = vweird.f32 %v1574
  %vm1581 = vmor %vm1579, %vm1580
  %v1582 = vsel %vm1581, %v1574, %v1578
  %v1583 = vand.u32 2147483647, %v1199
  %vm1584 = vcmp.eq.f32.partialorder %v1583, 8.507059e+37
  %v1585 = vand.u32 %v1199, 2147483648
  %v1586 = vor.u32 1.1754944e-38, %v1585
  %v1587 = vsel %vm1584, %v1586, %v1582
  %v1588 = vmul.f32 1.0, %v1587
  %v1589 = vrcp.pop %v1201
  %v1590 = vmul.f32 %v1201, %v1589
  %v1591 = vsub.f32 1.0, %v1590
  %v1592 = vmul.f32 %v1589, %v1591
  %v1593 = vadd.f32 %v1589, %v1592
  %vm1594 = vweird.f32 %v1201
  %vm1595 = vweird.f32 %v1589
  %vm1596 = vmor %vm1594, %vm1595
  %v1597 = vsel %vm1596, %v1589, %v1593
  %v1598 = vand.u32 2147483647, %v1201
  %vm1599 = vcmp.eq.f32.partialorder %v1598, 8.507059e+37
  %v1600 = vand.u32 %v1201, 2147483648
  %v1601 = vor.u32 1.1754944e-38, %v1600
  %v1602 = vsel %vm1599, %v1601, %v1597
  %v1603 = vmul.f32 1.0, %v1602
  %v1604 = vrcp.pop %v1203
  %v1605 = vmul.f32 %v1203, %v1604
  %v1606 = vsub.f32 1.0, %v1605
  %v1607 = vmul.f32 %v1604, %v1606
  %v1608 = vadd.f32 %v1604, %v1607
  %vm1609 = vweird.f32 %v1203
  %vm1610 = vweird.f32 %v1604
  %vm1611 = vmor %vm1609, %vm1610
  %v1612 = vsel %vm1611, %v1604, %v1608
  %v1613 = vand.u32 2147483647, %v1203
  %vm1614 = vcmp.eq.f32.partialorder %v1613, 8.507059e+37
  %v1615 = vand.u32 %v1203, 2147483648
  %v1616 = vor.u32 1.1754944e-38, %v1615
  %v1617 = vsel %vm1614, %v1616, %v1612
  %v1618 = vmul.f32 1.0, %v1617
  %v1619 = vrcp.pop %v1205
  %v1620 = vmul.f32 %v1205, %v1619
  %v1621 = vsub.f32 1.0, %v1620
  %v1622 = vmul.f32 %v1619, %v1621
  %v1623 = vadd.f32 %v1619, %v1622
  %vm1624 = vweird.f32 %v1205
  %vm1625 = vweird.f32 %v1619
  %vm1626 = vmor %vm1624, %vm1625
  %v1627 = vsel %vm1626, %v1619, %v1623
  %v1628 = vand.u32 2147483647, %v1205
  %vm1629 = vcmp.eq.f32.partialorder %v1628, 8.507059e+37
  %v1630 = vand.u32 %v1205, 2147483648
  %v1631 = vor.u32 1.1754944e-38, %v1630
  %v1632 = vsel %vm1629, %v1631, %v1627
  %v1633 = vmul.f32 1.0, %v1632
  %v1634 = vrcp.pop %v1207
  %v1635 = vmul.f32 %v1207, %v1634
  %v1636 = vsub.f32 1.0, %v1635
  %v1637 = vmul.f32 %v1634, %v1636
  %v1638 = vadd.f32 %v1634, %v1637
  %vm1639 = vweird.f32 %v1207
  %vm1640 = vweird.f32 %v1634
  %vm1641 = vmor %vm1639, %vm1640
  %v1642 = vsel %vm1641, %v1634, %v1638
  %v1643 = vand.u32 2147483647, %v1207
  %vm1644 = vcmp.eq.f32.partialorder %v1643, 8.507059e+37
  %v1645 = vand.u32 %v1207, 2147483648
  %v1646 = vor.u32 1.1754944e-38, %v1645
  %v1647 = vsel %vm1644, %v1646, %v1642
  %v1648 = vmul.f32 1.0, %v1647
  %v1649 = vrcp.pop %v1209
  %v1650 = vmul.f32 %v1209, %v1649
  %v1651 = vsub.f32 1.0, %v1650
  %v1652 = vmul.f32 %v1649, %v1651
  %v1653 = vadd.f32 %v1649, %v1652
  %vm1654 = vweird.f32 %v1209
  %vm1655 = vweird.f32 %v1649
  %vm1656 = vmor %vm1654, %vm1655
  %v1657 = vsel %vm1656, %v1649, %v1653
  %v1658 = vand.u32 2147483647, %v1209
  %vm1659 = vcmp.eq.f32.partialorder %v1658, 8.507059e+37
  %v1660 = vand.u32 %v1209, 2147483648
  %v1661 = vor.u32 1.1754944e-38, %v1660
  %v1662 = vsel %vm1659, %v1661, %v1657
  %v1663 = vmul.f32 1.0, %v1662
  %v1664 = vrcp.pop %v1211
  %v1665 = vmul.f32 %v1211, %v1664
  %v1666 = vsub.f32 1.0, %v1665
  %v1667 = vmul.f32 %v1664, %v1666
  %v1668 = vadd.f32 %v1664, %v1667
  %vm1669 = vweird.f32 %v1211
  %vm1670 = vweird.f32 %v1664
  %vm1671 = vmor %vm1669, %vm1670
  %v1672 = vsel %vm1671, %v1664, %v1668
  %v1673 = vand.u32 2147483647, %v1211
  %vm1674 = vcmp.eq.f32.partialorder %v1673, 8.507059e+37
  %v1675 = vand.u32 %v1211, 2147483648
  %v1676 = vor.u32 1.1754944e-38, %v1675
  %v1677 = vsel %vm1674, %v1676, %v1672
  %v1678 = vmul.f32 1.0, %v1677
  %v1679 = vrcp.pop %v1213
  %v1680 = vmul.f32 %v1213, %v1679
  %v1681 = vsub.f32 1.0, %v1680
  %v1682 = vmul.f32 %v1679, %v1681
  %v1683 = vadd.f32 %v1679, %v1682
  %vm1684 = vweird.f32 %v1213
  %vm1685 = vweird.f32 %v1679
  %vm1686 = vmor %vm1684, %vm1685
  %v1687 = vsel %vm1686, %v1679, %v1683
  %v1688 = vand.u32 2147483647, %v1213
  %vm1689 = vcmp.eq.f32.partialorder %v1688, 8.507059e+37
  %v1690 = vand.u32 %v1213, 2147483648
  %v1691 = vor.u32 1.1754944e-38, %v1690
  %v1692 = vsel %vm1689, %v1691, %v1687
  %v1693 = vmul.f32 1.0, %v1692
  %v1694 = vrcp.pop %v1215
  %v1695 = vmul.f32 %v1215, %v1694
  %v1696 = vsub.f32 1.0, %v1695
  %v1697 = vmul.f32 %v1694, %v1696
  %v1698 = vadd.f32 %v1694, %v1697
  %vm1699 = vweird.f32 %v1215
  %vm1700 = vweird.f32 %v1694
  %vm1701 = vmor %vm1699, %vm1700
  %v1702 = vsel %vm1701, %v1694, %v1698
  %v1703 = vand.u32 2147483647, %v1215
  %vm1704 = vcmp.eq.f32.partialorder %v1703, 8.507059e+37
  %v1705 = vand.u32 %v1215, 2147483648
  %v1706 = vor.u32 1.1754944e-38, %v1705
  %v1707 = vsel %vm1704, %v1706, %v1702
  %v1708 = vmul.f32 1.0, %v1707
  %v1709 = vrcp.pop %v1217
  %v1710 = vmul.f32 %v1217, %v1709
  %v1711 = vsub.f32 1.0, %v1710
  %v1712 = vmul.f32 %v1709, %v1711
  %v1713 = vadd.f32 %v1709, %v1712
  %vm1714 = vweird.f32 %v1217
  %vm1715 = vweird.f32 %v1709
  %vm1716 = vmor %vm1714, %vm1715
  %v1717 = vsel %vm1716, %v1709, %v1713
  %v1718 = vand.u32 2147483647, %v1217
  %vm1719 = vcmp.eq.f32.partialorder %v1718, 8.507059e+37
  %v1720 = vand.u32 %v1217, 2147483648
  %v1721 = vor.u32 1.1754944e-38, %v1720
  %v1722 = vsel %vm1719, %v1721, %v1717
  %v1723 = vmul.f32 1.0, %v1722
  %v1724 = vrcp.pop %v1219
  %v1725 = vmul.f32 %v1219, %v1724
  %v1726 = vsub.f32 1.0, %v1725
  %v1727 = vmul.f32 %v1724, %v1726
  %v1728 = vadd.f32 %v1724, %v1727
  %vm1729 = vweird.f32 %v1219
  %vm1730 = vweird.f32 %v1724
  %vm1731 = vmor %vm1729, %vm1730
  %v1732 = vsel %vm1731, %v1724, %v1728
  %v1733 = vand.u32 2147483647, %v1219
  %vm1734 = vcmp.eq.f32.partialorder %v1733, 8.507059e+37
  %v1735 = vand.u32 %v1219, 2147483648
  %v1736 = vor.u32 1.1754944e-38, %v1735
  %v1737 = vsel %vm1734, %v1736, %v1732
  %v1738 = vmul.f32 1.0, %v1737
  %v1739 = vrcp.pop %v1221
  %v1740 = vmul.f32 %v1221, %v1739
  %v1741 = vsub.f32 1.0, %v1740
  %v1742 = vmul.f32 %v1739, %v1741
  %v1743 = vadd.f32 %v1739, %v1742
  %vm1744 = vweird.f32 %v1221
  %vm1745 = vweird.f32 %v1739
  %vm1746 = vmor %vm1744, %vm1745
  %v1747 = vsel %vm1746, %v1739, %v1743
  %v1748 = vand.u32 2147483647, %v1221
  %vm1749 = vcmp.eq.f32.partialorder %v1748, 8.507059e+37
  %v1750 = vand.u32 %v1221, 2147483648
  %v1751 = vor.u32 1.1754944e-38, %v1750
  %v1752 = vsel %vm1749, %v1751, %v1747
  %v1753 = vmul.f32 1.0, %v1752
  %v1754 = vrcp.pop %v1223
  %v1755 = vmul.f32 %v1223, %v1754
  %v1756 = vsub.f32 1.0, %v1755
  %v1757 = vmul.f32 %v1754, %v1756
  %v1758 = vadd.f32 %v1754, %v1757
  %vm1759 = vweird.f32 %v1223
  %vm1760 = vweird.f32 %v1754
  %vm1761 = vmor %vm1759, %vm1760
  %v1762 = vsel %vm1761, %v1754, %v1758
  %v1763 = vand.u32 2147483647, %v1223
  %vm1764 = vcmp.eq.f32.partialorder %v1763, 8.507059e+37
  %v1765 = vand.u32 %v1223, 2147483648
  %v1766 = vor.u32 1.1754944e-38, %v1765
  %v1767 = vsel %vm1764, %v1766, %v1762
  %v1768 = vmul.f32 1.0, %v1767
  %v1769 = vrcp.pop %v1225
  %v1770 = vmul.f32 %v1225, %v1769
  %v1771 = vsub.f32 1.0, %v1770
  %v1772 = vmul.f32 %v1769, %v1771
  %v1773 = vadd.f32 %v1769, %v1772
  %vm1774 = vweird.f32 %v1225
  %vm1775 = vweird.f32 %v1769
  %vm1776 = vmor %vm1774, %vm1775
  %v1777 = vsel %vm1776, %v1769, %v1773
  %v1778 = vand.u32 2147483647, %v1225
  %vm1779 = vcmp.eq.f32.partialorder %v1778, 8.507059e+37
  %v1780 = vand.u32 %v1225, 2147483648
  %v1781 = vor.u32 1.1754944e-38, %v1780
  %v1782 = vsel %vm1779, %v1781, %v1777
  %v1783 = vmul.f32 1.0, %v1782
  %v1784 = vrcp.pop %v1227
  %v1785 = vmul.f32 %v1227, %v1784
  %v1786 = vsub.f32 1.0, %v1785
  %v1787 = vmul.f32 %v1784, %v1786
  %v1788 = vadd.f32 %v1784, %v1787
  %vm1789 = vweird.f32 %v1227
  %vm1790 = vweird.f32 %v1784
  %vm1791 = vmor %vm1789, %vm1790
  %v1792 = vsel %vm1791, %v1784, %v1788
  %v1793 = vand.u32 2147483647, %v1227
  %vm1794 = vcmp.eq.f32.partialorder %v1793, 8.507059e+37
  %v1795 = vand.u32 %v1227, 2147483648
  %v1796 = vor.u32 1.1754944e-38, %v1795
  %v1797 = vsel %vm1794, %v1796, %v1792
  %v1798 = vmul.f32 1.0, %v1797
  %v1799 = vrcp.pop %v1229
  %v1800 = vmul.f32 %v1229, %v1799
  %v1801 = vsub.f32 1.0, %v1800
  %v1802 = vmul.f32 %v1799, %v1801
  %v1803 = vadd.f32 %v1799, %v1802
  %vm1804 = vweird.f32 %v1229
  %vm1805 = vweird.f32 %v1799
  %vm1806 = vmor %vm1804, %vm1805
  %v1807 = vsel %vm1806, %v1799, %v1803
  %v1808 = vand.u32 2147483647, %v1229
  %vm1809 = vcmp.eq.f32.partialorder %v1808, 8.507059e+37
  %v1810 = vand.u32 %v1229, 2147483648
  %v1811 = vor.u32 1.1754944e-38, %v1810
  %v1812 = vsel %vm1809, %v1811, %v1807
  %v1813 = vmul.f32 1.0, %v1812
  %v1814 = vrcp.pop %v1231
  %v1815 = vmul.f32 %v1231, %v1814
  %v1816 = vsub.f32 1.0, %v1815
  %v1817 = vmul.f32 %v1814, %v1816
  %v1818 = vadd.f32 %v1814, %v1817
  %vm1819 = vweird.f32 %v1231
  %vm1820 = vweird.f32 %v1814
  %vm1821 = vmor %vm1819, %vm1820
  %v1822 = vsel %vm1821, %v1814, %v1818
  %v1823 = vand.u32 2147483647, %v1231
  %vm1824 = vcmp.eq.f32.partialorder %v1823, 8.507059e+37
  %v1825 = vand.u32 %v1231, 2147483648
  %v1826 = vor.u32 1.1754944e-38, %v1825
  %v1827 = vsel %vm1824, %v1826, %v1822
  %v1828 = vmul.f32 1.0, %v1827
  %v1829 = vrcp.pop %v1233
  %v1830 = vmul.f32 %v1233, %v1829
  %v1831 = vsub.f32 1.0, %v1830
  %v1832 = vmul.f32 %v1829, %v1831
  %v1833 = vadd.f32 %v1829, %v1832
  %vm1834 = vweird.f32 %v1233
  %vm1835 = vweird.f32 %v1829
  %vm1836 = vmor %vm1834, %vm1835
  %v1837 = vsel %vm1836, %v1829, %v1833
  %v1838 = vand.u32 2147483647, %v1233
  %vm1839 = vcmp.eq.f32.partialorder %v1838, 8.507059e+37
  %v1840 = vand.u32 %v1233, 2147483648
  %v1841 = vor.u32 1.1754944e-38, %v1840
  %v1842 = vsel %vm1839, %v1841, %v1837
  %v1843 = vmul.f32 1.0, %v1842
  %v1844 = vmul.f32 %v1252, %v1378
  %v1845 = vmul.f32 %v1255, %v1393
  %v1846 = vmul.f32 %v1258, %v1408
  %v1847 = vmul.f32 %v1261, %v1423
  %v1848 = vmul.f32 %v1264, %v1438
  %v1849 = vmul.f32 %v1267, %v1453
  %v1850 = vmul.f32 %v1270, %v1468
  %v1851 = vmul.f32 %v1273, %v1483
  %v1852 = vmul.f32 %v1276, %v1498
  %v1853 = vmul.f32 %v1279, %v1513
  %v1854 = vmul.f32 %v1282, %v1528
  %v1855 = vmul.f32 %v1285, %v1543
  %v1856 = vmul.f32 %v1288, %v1558
  %v1857 = vmul.f32 %v1291, %v1573
  %v1858 = vmul.f32 %v1294, %v1588
  %v1859 = vmul.f32 %v1297, %v1603
  %v1860 = vmul.f32 %v1317, %v1618
  %v1861 = vmul.f32 %v1320, %v1633
  %v1862 = vmul.f32 %v1323, %v1648
  %v1863 = vmul.f32 %v1326, %v1663
  %v1864 = vmul.f32 %v1329, %v1678
  %v1865 = vmul.f32 %v1332, %v1693
  %v1866 = vmul.f32 %v1335, %v1708
  %v1867 = vmul.f32 %v1338, %v1723
  %v1868 = vmul.f32 %v1341, %v1738
  %v1869 = vmul.f32 %v1344, %v1753
  %v1870 = vmul.f32 %v1347, %v1768
  %v1871 = vmul.f32 %v1350, %v1783
  %v1872 = vmul.f32 %v1353, %v1798
  %v1873 = vmul.f32 %v1356, %v1813
  %v1874 = vmul.f32 %v1359, %v1828
  %v1875 = vmul.f32 %v1362, %v1843
  %1876 = vst.msk [vmem:[%s2] sm:$0xff] %vm671, %v1844
  %1877 = vst.msk [vmem:[%s2 + $0x8] sm:$0xff] %vm671, %v1845
  %1878 = vst.msk [vmem:[%s2 + $0x10] sm:$0xff] %vm671, %v1846
  %1879 = vst.msk [vmem:[%s2 + $0x18] sm:$0xff] %vm671, %v1847
  %1880 = vst.msk [vmem:[%s2 + $0x20] sm:$0xff] %vm671, %v1848
  %1881 = vst.msk [vmem:[%s2 + $0x28] sm:$0xff] %vm671, %v1849
  %1882 = vst.msk [vmem:[%s2 + $0x30] sm:$0xff] %vm671, %v1850
  %1883 = vst.msk [vmem:[%s2 + $0x38] sm:$0xff] %vm671, %v1851
  %1884 = vst.msk [vmem:[%s2 + $0x40] sm:$0xff] %vm671, %v1852
  %1885 = vst.msk [vmem:[%s2 + $0x48] sm:$0xff] %vm671, %v1853
  %1886 = vst.msk [vmem:[%s2 + $0x50] sm:$0xff] %vm671, %v1854
  %1887 = vst.msk [vmem:[%s2 + $0x58] sm:$0xff] %vm671, %v1855
  %1888 = vst.msk [vmem:[%s2 + $0x60] sm:$0xff] %vm671, %v1856
  %1889 = vst.msk [vmem:[%s2 + $0x68] sm:$0xff] %vm671, %v1857
  %1890 = vst.msk [vmem:[%s2 + $0x70] sm:$0xff] %vm671, %v1858
  %1891 = vst.msk [vmem:[%s2 + $0x78] sm:$0xff] %vm671, %v1859
  %1892 = vst.msk [vmem:[%s2 + $0x80] sm:$0xff] %vm671, %v1860
  %1893 = vst.msk [vmem:[%s2 + $0x88] sm:$0xff] %vm671, %v1861
  %1894 = vst.msk [vmem:[%s2 + $0x90] sm:$0xff] %vm671, %v1862
  %1895 = vst.msk [vmem:[%s2 + $0x98] sm:$0xff] %vm671, %v1863
  %1896 = vst.msk [vmem:[%s2 + $0xa0] sm:$0xff] %vm671, %v1864
  %1897 = vst.msk [vmem:[%s2 + $0xa8] sm:$0xff] %vm671, %v1865
  %1898 = vst.msk [vmem:[%s2 + $0xb0] sm:$0xff] %vm671, %v1866
  %1899 = vst.msk [vmem:[%s2 + $0xb8] sm:$0xff] %vm671, %v1867
  %1900 = vst.msk [vmem:[%s2 + $0xc0] sm:$0xff] %vm671, %v1868
  %1901 = vst.msk [vmem:[%s2 + $0xc8] sm:$0xff] %vm671, %v1869
  %1902 = vst.msk [vmem:[%s2 + $0xd0] sm:$0xff] %vm671, %v1870
  %1903 = vst.msk [vmem:[%s2 + $0xd8] sm:$0xff] %vm671, %v1871
  %1904 = vst.msk [vmem:[%s2 + $0xe0] sm:$0xff] %vm671, %v1872
  %1905 = vst.msk [vmem:[%s2 + $0xe8] sm:$0xff] %vm671, %v1873
  %1906 = vst.msk [vmem:[%s2 + $0xf0] sm:$0xff] %vm671, %v1874
  %1907 = vst.msk [vmem:[%s2 + $0xf8] sm:$0xff] %vm671, %v1875
  // Predicated region
  $region10: #{tpu_custom_call.1} parent=0 // pred_check
    _
  $region11: #{tpu_custom_call.1} parent=0 // pred_check_branch
    %1909 = sbr.rel (0) target = $region13
  $region12: #{tpu_custom_call.1} parent=0 // pred_region
    _
  $region13: #{tpu_custom_call.1} parent=0 // pred_fallthru
    _
  // Predicated region
  $region14: #{tpu_custom_call.1} parent=0 // pred_check
    _
  $region15: #{tpu_custom_call.1} parent=0 // pred_check_branch
    %1911 = sbr.rel (0) target = $region17
  $region16: #{tpu_custom_call.1} parent=0 // pred_region
    _
  $region17: #{tpu_custom_call.1} parent=0 // pred_fallthru
    _

</llo_original>
